<compile_context>
chip_gen: v5e
topology: v5e:2x2
jax: 0.10.0
libtpu: 0.0.40
codegen_flags: <defaults>
</compile_context>

<pallas_src>
import math
import functools

import jax
import jax.numpy as jnp
from jax.experimental import pallas as pl
from jax.experimental.pallas import tpu as pltpu


# ----------------------------------------------------------------------------
# In-kernel MAB stage (pure JAX ops on VMEM-resident arrays)
# ----------------------------------------------------------------------------
def _mab_stage(Q, K, p, num_heads):
    """One MAB block.  Q: (Bq, Nq, dQ), K: (Bt, Nk, dK), float32.
    p = (Wq, bq, Wk, bk, Wv, bv, Wo, bo); weights are bf16, biases f32.
    If Bq == 1 the query side (inducing points / PMA seeds) is shared across
    the batch tile and projected once.  Returns (Bt, Nq, dim_V) float32.

    Matches torch MAB.forward: scores scaled by 1/sqrt(dim_V) (full hidden dim),
    softmax over keys, residual with the UNscaled Q projection, then
    O = O + relu(fc_o(O)) (ln=False -> no LayerNorm)."""
    Wq, bq, Wk, bk, Wv, bv, Wo, bo = p
    Bq, Nq, dQ = Q.shape
    Bt, Nk, dK = K.shape
    D = Wq.shape[-1]
    dh = D // num_heads
    scale = 1.0 / math.sqrt(D)                 # reference uses sqrt(dim_V)
    bf16 = jnp.bfloat16

    # Projections as single big matmuls over all rows in the tile (MXU M = Bt*Nk).
    Q2 = Q.reshape(Bq * Nq, dQ).astype(bf16)
    K2 = K.reshape(Bt * Nk, dK).astype(bf16)
    Qp = jnp.dot(Q2, Wq, preferred_element_type=jnp.float32) + bq          # (Bq*Nq, D)
    # Fold the score scale into K (K is only used for scores; Q feeds the residual).
    Kp = (jnp.dot(K2, Wk, preferred_element_type=jnp.float32) + bk) * scale
    Vp = jnp.dot(K2, Wv, preferred_element_type=jnp.float32) + bv

    Kp3 = Kp.reshape(Bt, Nk, D)
    Vp3 = Vp.reshape(Bt, Nk, D)

    # Per-head lane masks: head split lives on the lane axis; masking instead of
    # slicing avoids sub-128-lane relayouts and the lane-axis concat of head outs.
    lane = jax.lax.broadcasted_iota(jnp.int32, (1, D), 1)
    masks = [(lane >= h * dh) & (lane < (h + 1) * dh) for h in range(num_heads)]

    shared_q = (Bq == 1)
    if shared_q:
        qb_shared = Qp                                           # (Nq, D)
        qh_shared = [jnp.where(m, Qp, 0.0).astype(bf16) for m in masks]
    else:
        Qp3 = Qp.reshape(Bt, Nq, D)

    outs = []
    for b in range(Bt):                      # short unrolled loop over the tile
        qb = qb_shared if shared_q else Qp3[b]                   # (Nq, D) f32
        kb = Kp3[b].astype(bf16)                                 # (Nk, D)
        vb = Vp3[b].astype(bf16)                                 # (Nk, D)
        o_attn = jnp.zeros((Nq, D), jnp.float32)
        for h in range(num_heads):           # static unrolled loop over heads
            qh = qh_shared[h] if shared_q else jnp.where(masks[h], qb, 0.0).astype(bf16)
            # masked-Q contraction over full D == Q_h . K_h^T  (other lanes are 0)
            s = jax.lax.dot_general(qh, kb, (((1,), (1,)), ((), ())),
                                    preferred_element_type=jnp.float32)      # (Nq, Nk)
            s = s - jnp.max(s, axis=-1, keepdims=True)
            e = jnp.exp(s)
            pattn = e * pl.reciprocal(jnp.sum(e, axis=-1, keepdims=True), approx=True)
            pv = jnp.dot(pattn.astype(bf16), vb, preferred_element_type=jnp.float32)
            o_attn = o_attn + jnp.where(masks[h], pv, 0.0)       # head-h lanes only
        outs.append(qb + o_attn)             # residual with the UNscaled Q proj
    O2 = outs[0] if Bt == 1 else jnp.concatenate(outs, axis=0)   # (Bt*Nq, D)

    # O = O + relu(fc_o(O)) — one big matmul over all rows in the tile.
    O2 = O2 + jax.nn.relu(
        jnp.dot(O2.astype(bf16), Wo, preferred_element_type=jnp.float32) + bo)
    return O2.reshape(Bt, Nq, D)


def _pick(src, X, prev, seeds):
    if src == 'x':
        return X
    if src == 'prev':
        return prev
    return seeds[src[1]]                      # ('seed', i)


# ----------------------------------------------------------------------------
# Fused "MAB chain" kernel: runs a sequence of MAB stages (+ optional Linear)
# entirely in VMEM for one batch tile.  Covers SAB, ISAB, PMA and the whole
# default decoder with a single kernel body.
# ----------------------------------------------------------------------------
def _chain_kernel(*refs, num_heads, stages, n_seeds, has_linear):
    o_ref = refs[-1]
    x_ref = refs[0]
    seed_refs = refs[1:1 + n_seeds]
    pos = 1 + n_seeds
    n_stages = len(stages)
    stage_param_refs = [refs[pos + 8 * i: pos + 8 * (i + 1)] for i in range(n_stages)]
    pos += 8 * n_stages
    lin_w_ref, lin_b_ref = (refs[pos], refs[pos + 1]) if has_linear else (None, None)

    X = x_ref[...]                            # (Bt, N, d_in) f32
    seeds = [r[...] for r in seed_refs]       # each (1, n, D) f32

    prev = None
    for (q_src, k_src), prefs in zip(stages, stage_param_refs):
        params = tuple(r[...] for r in prefs)
        Q = _pick(q_src, X, prev, seeds)
        K = _pick(k_src, X, prev, seeds)
        prev = _mab_stage(Q, K, params, num_heads)

    if has_linear:                            # fused final nn.Linear
        Wf = lin_w_ref[...]                   # bf16
        bf_ = lin_b_ref[...]                  # f32
        bt, nq, D = prev.shape
        y = jnp.dot(prev.reshape(bt * nq, D).astype(jnp.bfloat16), Wf,
                    preferred_element_type=jnp.float32) + bf_
        prev = y.reshape(bt, nq, Wf.shape[-1])

    o_ref[...] = prev.astype(o_ref.dtype)


# ----------------------------------------------------------------------------
# pallas_call wrapper
# ----------------------------------------------------------------------------
_MAB_KEYS = ('Wq', 'bq', 'Wk', 'bk', 'Wv', 'bv', 'Wo', 'bo')


def _rep_spec(shape):
    """BlockSpec for a parameter kept VMEM-resident across the batch grid."""
    nd = len(shape)
    return pl.BlockSpec(shape, lambda *_: (0,) * nd)


def _run_chain(x, seeds, stage_params, stages, final_linear, num_heads, bt):
    """x: (Bp, N, d_in) with Bp a multiple of bt.  Returns (Bp, nq, d_out)."""
    Bp, N, d_in = x.shape
    assert Bp % bt == 0
    grid = Bp // bt

    args = [x]
    in_specs = [pl.BlockSpec((bt, N, d_in), lambda b: (b, 0, 0))]
    vmem_bytes = 2 * bt * N * d_in * 4        # double-buffered input tile

    for s in seeds:                           # seeds stay resident, no broadcast_to
        args.append(s)
        in_specs.append(_rep_spec(s.shape))
        vmem_bytes += int(s.size) * 4

    for p in stage_params:
        for k in _MAB_KEYS:
            a = p[k]
            if k[0] == 'W':
                a = a.astype(jnp.bfloat16)    # bf16 MXU operands
            args.append(a)
            in_specs.append(_rep_spec(a.shape))
            vmem_bytes += int(a.size) * a.dtype.itemsize

    has_lin = final_linear is not None
    if has_lin:
        wf = final_linear['W'].astype(jnp.bfloat16)
        args += [wf, final_linear['b']]
        in_specs += [_rep_spec(wf.shape), _rep_spec(final_linear['b'].shape)]
        vmem_bytes += int(wf.size) * 2 + int(final_linear['b'].size) * 4

    # Output geometry of the chain.
    nq = N
    for q_src, _ in stages:
        if q_src == 'x':
            nq = N
        elif isinstance(q_src, tuple):
            nq = seeds[q_src[1]].shape[1]
        # 'prev': nq unchanged
    D = stage_params[-1]['Wv'].shape[-1]
    d_out = final_linear['W'].shape[-1] if has_lin else D
    vmem_bytes += 2 * bt * nq * d_out * 4 + 6 * bt * max(N, nq) * max(D, d_in) * 4

    cp_kwargs = dict(dimension_semantics=("parallel",))
    if vmem_bytes > 12 * 1024 * 1024:
        # Default scoped VMEM (16 MiB v5e / 32 MiB v6e,v7x) would block large
        # batch tiles; raise it but stay well under v7x's 64 MiB physical VMEM.
        cp_kwargs['vmem_limit_bytes'] = int(min(max(2 * vmem_bytes, 32 * 1024 * 1024),
                                                48 * 1024 * 1024))

    kernel = functools.partial(_chain_kernel, num_heads=num_heads,
                               stages=tuple(stages), n_seeds=len(seeds),
                               has_linear=has_lin)
    return pl.pallas_call(
        kernel,
        out_shape=jax.ShapeDtypeStruct((Bp, nq, d_out), jnp.float32),
        grid=(grid,),
        in_specs=in_specs,
        out_specs=pl.BlockSpec((bt, nq, d_out), lambda b: (b, 0, 0)),
        compiler_params=pltpu.CompilerParams(**cp_kwargs),
    )(*args)


def _pick_batch_tile(B, n_rows):
    """Batch elements per grid step: target a few hundred MXU rows for the
    projection matmuls, cap for compile time / v7x's 64 MiB VMEM, and keep
    >= 2 grid steps so the 'parallel' axis can shard across v7x's two TCs."""
    bt = max(1, min(256 // max(n_rows, 1), 8, B))
    while bt > 1 and pl.cdiv(B, bt) < 2:
        bt = max(1, bt // 2)
    return bt


# ----------------------------------------------------------------------------
# Deterministic parameter init (shapes follow the torch __init__ exactly)
# ----------------------------------------------------------------------------
def _xavier_uniform(key, shape):
    fan_in, fan_out = shape[-2], shape[-1]
    bound = math.sqrt(6.0 / (fan_in + fan_out))
    return jax.random.uniform(key, shape, jnp.float32, -bound, bound)


def _init_linear(key, din, dout):
    k1, k2 = jax.random.split(key)
    bound = 1.0 / math.sqrt(din)
    return {'W': jax.random.uniform(k1, (din, dout), jnp.float32, -bound, bound),
            'b': jax.random.uniform(k2, (1, dout), jnp.float32, -bound, bound)}


def _init_mab(key, dim_Q, dim_K, dim_V):
    kq, kk, kv, ko = jax.random.split(key, 4)
    q = _init_linear(kq, dim_Q, dim_V)
    k = _init_linear(kk, dim_K, dim_V)
    v = _init_linear(kv, dim_K, dim_V)
    o = _init_linear(ko, dim_V, dim_V)
    return {'Wq': q['W'], 'bq': q['b'], 'Wk': k['W'], 'bk': k['b'],
            'Wv': v['W'], 'bv': v['b'], 'Wo': o['W'], 'bo': o['b']}


def _init_isab(key, dim_in, dim_out, num_inds):
    k1, k2, k3 = jax.random.split(key, 3)
    return {'I': _xavier_uniform(k1, (1, num_inds, dim_out)),
            'mab0': _init_mab(k2, dim_out, dim_in, dim_out),
            'mab1': _init_mab(k3, dim_in, dim_out, dim_out)}


def _init_pma(key, dim, num_seeds):
    k1, k2 = jax.random.split(key)
    return {'S': _xavier_uniform(k1, (1, num_seeds, dim)),
            'mab': _init_mab(k2, dim, dim, dim)}


def init_setpool(key, dim_input, num_outputs, dim_output, num_inds=32,
                 dim_hidden=128, num_heads=4, mode=''):
    ks = iter(jax.random.split(key, 16))
    layers_enc, layers_dec = [], []
    if 'sab' in mode:
        layers_enc.append(('sab', _init_mab(next(ks), dim_input, dim_input, dim_hidden)))
        layers_enc.append(('sab', _init_mab(next(ks), dim_hidden, dim_hidden, dim_hidden)))
    else:
        layers_enc.append(('isab', _init_isab(next(ks), dim_input, dim_hidden, num_inds)))
        layers_enc.append(('isab', _init_isab(next(ks), dim_hidden, dim_hidden, num_inds)))
    layers_dec.append(('pma', _init_pma(next(ks), dim_hidden, num_outputs)))
    if 'PF' in mode:
        layers_dec.append(('linear', _init_linear(next(ks), dim_hidden, dim_output)))
    elif 'P' in mode:
        pass
    else:
        layers_dec.append(('sab', _init_mab(next(ks), dim_hidden, dim_hidden, dim_hidden)))
        layers_dec.append(('sab', _init_mab(next(ks), dim_hidden, dim_hidden, dim_hidden)))
        layers_dec.append(('linear', _init_linear(next(ks), dim_hidden, dim_output)))
    return {'enc': layers_enc, 'dec': layers_dec, 'num_heads': num_heads}


# ----------------------------------------------------------------------------
# SetPool forward
# ----------------------------------------------------------------------------
def setpool_forward(X, params, batch_tile=None):
    nh = params['num_heads']
    B, N, _ = X.shape
    bt = batch_tile if batch_tile is not None else _pick_batch_tile(B, N)
    Bp = pl.cdiv(B, bt) * bt
    x = jnp.pad(X, ((0, Bp - B), (0, 0), (0, 0))) if Bp != B else X

    # Encoder: each ISAB (two MABs) or SAB runs as ONE fused pallas_call.
    for kind, p in params['enc']:
        if kind == 'isab':          # H = MAB(I, X); out = MAB(X, H)
            x = _run_chain(x, seeds=[p['I']],
                           stage_params=[p['mab0'], p['mab1']],
                           stages=((('seed', 0), 'x'), ('x', 'prev')),
                           final_linear=None, num_heads=nh, bt=bt)
        else:                       # SAB = MAB(X, X)
            x = _run_chain(x, seeds=[], stage_params=[p],
                           stages=(('x', 'x'),),
                           final_linear=None, num_heads=nh, bt=bt)

    # Decoder: fuse PMA [+ SAB + SAB] [+ Linear] into ONE pallas_call so every
    # intermediate activation stays in VMEM (no HBM round trips between stages).
    seeds, stage_params, stages, lin = [], [], [], None
    for kind, p in params['dec']:
        if kind == 'pma':           # PMA = MAB(S, X)
            seeds.append(p['S'])
            stage_params.append(p['mab'])
            stages.append((('seed', len(seeds) - 1), 'x'))
        elif kind == 'sab':         # SAB = MAB(Y, Y)
            stage_params.append(p)
            stages.append(('prev', 'prev'))
        elif kind == 'linear':      # nn.Linear fused at the end of the chain
            lin = p
    x = _run_chain(x, seeds=seeds, stage_params=stage_params,
                   stages=tuple(stages), final_linear=lin, num_heads=nh, bt=bt)
    return x[:B]


if __name__ == "__main__":
    # Small, shape-consistent example (B=5 exercises batch tiling + padding).
    B, N = 5, 8
    dim_input, num_outputs, dim_output = 4, 2, 16
    num_inds, dim_hidden, num_heads = 8, 32, 4
    mode = "default"   # neither 'sab' nor 'P' -> ISABx2 enc, PMA+SAB+SAB+Linear dec

    key = jax.random.PRNGKey(0)
    kx, kp = jax.random.split(key)
    X = jax.random.normal(kx, (B, N, dim_input), dtype=jnp.float32)
    params = init_setpool(kp, dim_input, num_outputs, dim_output,
                          num_inds=num_inds, dim_hidden=dim_hidden,
                          num_heads=num_heads, mode=mode)

    out = setpool_forward(X, params)
    out = jax.block_until_ready(out)

    assert out.shape == (B, num_outputs, dim_output), out.shape
    assert bool(jnp.all(jnp.isfinite(out)))
    print("KERNEL_OK")
</pallas_src>

<mosaic_0001>
module attributes {stable_mosaic.version = 11 : i64} {
  func.func @_chain_kernel(%arg0: i32, %arg1: memref<2x8x4xf32, #tpu.memory_space<vmem>>, %arg2: memref<1x8x32xf32, #tpu.memory_space<vmem>>, %arg3: memref<32x32xbf16, #tpu.memory_space<vmem>>, %arg4: memref<1x32xf32, #tpu.memory_space<vmem>>, %arg5: memref<4x32xbf16, #tpu.memory_space<vmem>>, %arg6: memref<1x32xf32, #tpu.memory_space<vmem>>, %arg7: memref<4x32xbf16, #tpu.memory_space<vmem>>, %arg8: memref<1x32xf32, #tpu.memory_space<vmem>>, %arg9: memref<32x32xbf16, #tpu.memory_space<vmem>>, %arg10: memref<1x32xf32, #tpu.memory_space<vmem>>, %arg11: memref<4x32xbf16, #tpu.memory_space<vmem>>, %arg12: memref<1x32xf32, #tpu.memory_space<vmem>>, %arg13: memref<32x32xbf16, #tpu.memory_space<vmem>>, %arg14: memref<1x32xf32, #tpu.memory_space<vmem>>, %arg15: memref<32x32xbf16, #tpu.memory_space<vmem>>, %arg16: memref<1x32xf32, #tpu.memory_space<vmem>>, %arg17: memref<32x32xbf16, #tpu.memory_space<vmem>>, %arg18: memref<1x32xf32, #tpu.memory_space<vmem>>, %arg19: memref<2x8x32xf32, #tpu.memory_space<vmem>>) attributes {dimension_semantics = [#tpu.dimension_semantics<parallel>], iteration_bounds = array<i64: 3>, scalar_prefetch = 0 : i64, scratch_operands = 0 : i64, tpu.core_type = #tpu.core_type<tc>, window_params = [{transform_indices = @transform_0, window_bounds = array<i64: 2, 8, 4>}, {pipeline_mode = #tpu.pipeline_mode<synchronous>, transform_indices = @transform_1, window_bounds = array<i64: 1, 8, 32>}, {pipeline_mode = #tpu.pipeline_mode<synchronous>, transform_indices = @transform_2, window_bounds = array<i64: 32, 32>}, {pipeline_mode = #tpu.pipeline_mode<synchronous>, transform_indices = @transform_3, window_bounds = array<i64: 1, 32>}, {pipeline_mode = #tpu.pipeline_mode<synchronous>, transform_indices = @transform_4, window_bounds = array<i64: 4, 32>}, {pipeline_mode = #tpu.pipeline_mode<synchronous>, transform_indices = @transform_5, window_bounds = array<i64: 1, 32>}, {pipeline_mode = #tpu.pipeline_mode<synchronous>, transform_indices = @transform_6, window_bounds = array<i64: 4, 32>}, {pipeline_mode = #tpu.pipeline_mode<synchronous>, transform_indices = @transform_7, window_bounds = array<i64: 1, 32>}, {pipeline_mode = #tpu.pipeline_mode<synchronous>, transform_indices = @transform_8, window_bounds = array<i64: 32, 32>}, {pipeline_mode = #tpu.pipeline_mode<synchronous>, transform_indices = @transform_9, window_bounds = array<i64: 1, 32>}, {pipeline_mode = #tpu.pipeline_mode<synchronous>, transform_indices = @transform_10, window_bounds = array<i64: 4, 32>}, {pipeline_mode = #tpu.pipeline_mode<synchronous>, transform_indices = @transform_11, window_bounds = array<i64: 1, 32>}, {pipeline_mode = #tpu.pipeline_mode<synchronous>, transform_indices = @transform_12, window_bounds = array<i64: 32, 32>}, {pipeline_mode = #tpu.pipeline_mode<synchronous>, transform_indices = @transform_13, window_bounds = array<i64: 1, 32>}, {pipeline_mode = #tpu.pipeline_mode<synchronous>, transform_indices = @transform_14, window_bounds = array<i64: 32, 32>}, {pipeline_mode = #tpu.pipeline_mode<synchronous>, transform_indices = @transform_15, window_bounds = array<i64: 1, 32>}, {pipeline_mode = #tpu.pipeline_mode<synchronous>, transform_indices = @transform_16, window_bounds = array<i64: 32, 32>}, {pipeline_mode = #tpu.pipeline_mode<synchronous>, transform_indices = @transform_17, window_bounds = array<i64: 1, 32>}, {transform_indices = @transform_18, window_bounds = array<i64: 2, 8, 32>}]} {
    %c0 = arith.constant 0 : index
    %c0_0 = arith.constant 0 : index
    %c0_1 = arith.constant 0 : index
    %0 = vector.load %arg1[%c0, %c0_0, %c0_1] : memref<2x8x4xf32, #tpu.memory_space<vmem>>, vector<2x8x4xf32>
    %c0_2 = arith.constant 0 : index
    %c0_3 = arith.constant 0 : index
    %c0_4 = arith.constant 0 : index
    %1 = vector.load %arg2[%c0_2, %c0_3, %c0_4] : memref<1x8x32xf32, #tpu.memory_space<vmem>>, vector<1x8x32xf32>
    %c0_5 = arith.constant 0 : index
    %c0_6 = arith.constant 0 : index
    %2 = vector.load %arg3[%c0_5, %c0_6] : memref<32x32xbf16, #tpu.memory_space<vmem>>, vector<32x32xbf16>
    %c0_7 = arith.constant 0 : index
    %c0_8 = arith.constant 0 : index
    %3 = vector.load %arg4[%c0_7, %c0_8] : memref<1x32xf32, #tpu.memory_space<vmem>>, vector<1x32xf32>
    %c0_9 = arith.constant 0 : index
    %c0_10 = arith.constant 0 : index
    %4 = vector.load %arg5[%c0_9, %c0_10] : memref<4x32xbf16, #tpu.memory_space<vmem>>, vector<4x32xbf16>
    %c0_11 = arith.constant 0 : index
    %c0_12 = arith.constant 0 : index
    %5 = vector.load %arg6[%c0_11, %c0_12] : memref<1x32xf32, #tpu.memory_space<vmem>>, vector<1x32xf32>
    %c0_13 = arith.constant 0 : index
    %c0_14 = arith.constant 0 : index
    %6 = vector.load %arg7[%c0_13, %c0_14] : memref<4x32xbf16, #tpu.memory_space<vmem>>, vector<4x32xbf16>
    %c0_15 = arith.constant 0 : index
    %c0_16 = arith.constant 0 : index
    %7 = vector.load %arg8[%c0_15, %c0_16] : memref<1x32xf32, #tpu.memory_space<vmem>>, vector<1x32xf32>
    %c0_17 = arith.constant 0 : index
    %c0_18 = arith.constant 0 : index
    %8 = vector.load %arg9[%c0_17, %c0_18] : memref<32x32xbf16, #tpu.memory_space<vmem>>, vector<32x32xbf16>
    %c0_19 = arith.constant 0 : index
    %c0_20 = arith.constant 0 : index
    %9 = vector.load %arg10[%c0_19, %c0_20] : memref<1x32xf32, #tpu.memory_space<vmem>>, vector<1x32xf32>
    %10 = vector.shape_cast %1 : vector<1x8x32xf32> to vector<8x32xf32>
    %11 = arith.truncf %10 : vector<8x32xf32> to vector<8x32xbf16>
    %12 = vector.shape_cast %0 : vector<2x8x4xf32> to vector<16x4xf32>
    %13 = arith.truncf %12 : vector<16x4xf32> to vector<16x4xbf16>
    %cst = arith.constant dense<0.000000e+00> : vector<8x32xf32>
    %14 = tpu.matmul %11, %2, %cst {dimension_numbers = #tpu.dot_dimension_numbers<[1], [0], [0], [1], [0, 0, 1, 1], [], []>} : vector<8x32xbf16>, vector<32x32xbf16>, vector<8x32xf32> -> vector<8x32xf32>
    %15 = vector.broadcast %3 : vector<1x32xf32> to vector<8x32xf32>
    %16 = arith.addf %14, %15 : vector<8x32xf32>
    %cst_21 = arith.constant dense<0.000000e+00> : vector<16x32xf32>
    %17 = tpu.matmul %13, %4, %cst_21 {dimension_numbers = #tpu.dot_dimension_numbers<[1], [0], [0], [1], [0, 0, 1, 1], [], []>} : vector<16x4xbf16>, vector<4x32xbf16>, vector<16x32xf32> -> vector<16x32xf32>
    %18 = vector.broadcast %5 : vector<1x32xf32> to vector<16x32xf32>
    %19 = arith.addf %17, %18 : vector<16x32xf32>
    %cst_22 = arith.constant 0.176776692 : f32
    %20 = vector.broadcast %cst_22 : f32 to vector<16x32xf32>
    %21 = arith.mulf %19, %20 : vector<16x32xf32>
    %cst_23 = arith.constant dense<0.000000e+00> : vector<16x32xf32>
    %22 = tpu.matmul %13, %6, %cst_23 {dimension_numbers = #tpu.dot_dimension_numbers<[1], [0], [0], [1], [0, 0, 1, 1], [], []>} : vector<16x4xbf16>, vector<4x32xbf16>, vector<16x32xf32> -> vector<16x32xf32>
    %23 = vector.broadcast %7 : vector<1x32xf32> to vector<16x32xf32>
    %24 = arith.addf %22, %23 : vector<16x32xf32>
    %25 = vector.shape_cast %21 : vector<16x32xf32> to vector<2x8x32xf32>
    %26 = vector.shape_cast %24 : vector<16x32xf32> to vector<2x8x32xf32>
    %27 = tpu.iota {dimensions = array<i32: 1>} : vector<1x32xi32>
    %c0_i32 = arith.constant 0 : i32
    %28 = vector.broadcast %c0_i32 : i32 to vector<1x32xi32>
    %29 = arith.cmpi sge, %27, %28 : vector<1x32xi32>
    %c8_i32 = arith.constant 8 : i32
    %30 = vector.broadcast %c8_i32 : i32 to vector<1x32xi32>
    %31 = arith.cmpi slt, %27, %30 : vector<1x32xi32>
    %32 = arith.andi %29, %31 : vector<1x32xi1>
    %c8_i32_24 = arith.constant 8 : i32
    %33 = vector.broadcast %c8_i32_24 : i32 to vector<1x32xi32>
    %34 = arith.cmpi sge, %27, %33 : vector<1x32xi32>
    %c16_i32 = arith.constant 16 : i32
    %35 = vector.broadcast %c16_i32 : i32 to vector<1x32xi32>
    %36 = arith.cmpi slt, %27, %35 : vector<1x32xi32>
    %37 = arith.andi %34, %36 : vector<1x32xi1>
    %c16_i32_25 = arith.constant 16 : i32
    %38 = vector.broadcast %c16_i32_25 : i32 to vector<1x32xi32>
    %39 = arith.cmpi sge, %27, %38 : vector<1x32xi32>
    %c24_i32 = arith.constant 24 : i32
    %40 = vector.broadcast %c24_i32 : i32 to vector<1x32xi32>
    %41 = arith.cmpi slt, %27, %40 : vector<1x32xi32>
    %42 = arith.andi %39, %41 : vector<1x32xi1>
    %c24_i32_26 = arith.constant 24 : i32
    %43 = vector.broadcast %c24_i32_26 : i32 to vector<1x32xi32>
    %44 = arith.cmpi sge, %27, %43 : vector<1x32xi32>
    %c32_i32 = arith.constant 32 : i32
    %45 = vector.broadcast %c32_i32 : i32 to vector<1x32xi32>
    %46 = arith.cmpi slt, %27, %45 : vector<1x32xi32>
    %47 = arith.andi %44, %46 : vector<1x32xi1>
    %cst_27 = arith.constant 0.000000e+00 : f32
    %48 = vector.shape_cast %32 : vector<1x32xi1> to vector<1x32xi1>
    %49 = vector.broadcast %48 : vector<1x32xi1> to vector<8x32xi1>
    %50 = vector.broadcast %cst_27 : f32 to vector<8x32xf32>
    %51 = arith.select %49, %16, %50 : vector<8x32xi1>, vector<8x32xf32>
    %52 = arith.truncf %51 : vector<8x32xf32> to vector<8x32xbf16>
    %cst_28 = arith.constant 0.000000e+00 : f32
    %53 = vector.shape_cast %37 : vector<1x32xi1> to vector<1x32xi1>
    %54 = vector.broadcast %53 : vector<1x32xi1> to vector<8x32xi1>
    %55 = vector.broadcast %cst_28 : f32 to vector<8x32xf32>
    %56 = arith.select %54, %16, %55 : vector<8x32xi1>, vector<8x32xf32>
    %57 = arith.truncf %56 : vector<8x32xf32> to vector<8x32xbf16>
    %cst_29 = arith.constant 0.000000e+00 : f32
    %58 = vector.shape_cast %42 : vector<1x32xi1> to vector<1x32xi1>
    %59 = vector.broadcast %58 : vector<1x32xi1> to vector<8x32xi1>
    %60 = vector.broadcast %cst_29 : f32 to vector<8x32xf32>
    %61 = arith.select %59, %16, %60 : vector<8x32xi1>, vector<8x32xf32>
    %62 = arith.truncf %61 : vector<8x32xf32> to vector<8x32xbf16>
    %cst_30 = arith.constant 0.000000e+00 : f32
    %63 = vector.shape_cast %47 : vector<1x32xi1> to vector<1x32xi1>
    %64 = vector.broadcast %63 : vector<1x32xi1> to vector<8x32xi1>
    %65 = vector.broadcast %cst_30 : f32 to vector<8x32xf32>
    %66 = arith.select %64, %16, %65 : vector<8x32xi1>, vector<8x32xf32>
    %67 = arith.truncf %66 : vector<8x32xf32> to vector<8x32xbf16>
    %68 = vector.extract_strided_slice %25 {offsets = [0, 0, 0], sizes = [1, 8, 32], strides = [1, 1, 1]} : vector<2x8x32xf32> to vector<1x8x32xf32>
    %69 = vector.shape_cast %68 : vector<1x8x32xf32> to vector<8x32xf32>
    %70 = arith.truncf %69 : vector<8x32xf32> to vector<8x32xbf16>
    %71 = vector.extract_strided_slice %26 {offsets = [0, 0, 0], sizes = [1, 8, 32], strides = [1, 1, 1]} : vector<2x8x32xf32> to vector<1x8x32xf32>
    %72 = vector.shape_cast %71 : vector<1x8x32xf32> to vector<8x32xf32>
    %73 = arith.truncf %72 : vector<8x32xf32> to vector<8x32xbf16>
    %cst_31 = arith.constant 0.000000e+00 : f32
    %74 = vector.broadcast %cst_31 : f32 to vector<8x32xf32>
    %cst_32 = arith.constant dense<0.000000e+00> : vector<8x8xf32>
    %75 = tpu.matmul %52, %70, %cst_32 {dimension_numbers = #tpu.dot_dimension_numbers<[1], [1], [0], [0], [0, 0, 1, 0], [], []>} : vector<8x32xbf16>, vector<8x32xbf16>, vector<8x8xf32> -> vector<8x8xf32>
    %cst_33 = arith.constant dense<0xFF800000> : vector<8xf32>
    %76 = vector.multi_reduction <maximumf>, %75, %cst_33 [1] : vector<8x8xf32> to vector<8xf32>
    %77 = vector.shape_cast %76 : vector<8xf32> to vector<8x1xf32>
    %78 = vector.broadcast %77 : vector<8x1xf32> to vector<8x8xf32>
    %79 = arith.subf %75, %78 : vector<8x8xf32>
    %80 = math.exp %79 : vector<8x8xf32>
    %cst_34 = arith.constant dense<0.000000e+00> : vector<8xf32>
    %81 = vector.multi_reduction <add>, %80, %cst_34 [1] : vector<8x8xf32> to vector<8xf32>
    %82 = vector.shape_cast %81 : vector<8xf32> to vector<8x1xf32>
    %83 = tpu.reciprocal %82 {approx = true} : vector<8x1xf32> -> vector<8x1xf32>
    %84 = vector.broadcast %83 : vector<8x1xf32> to vector<8x8xf32>
    %85 = arith.mulf %80, %84 : vector<8x8xf32>
    %86 = arith.truncf %85 : vector<8x8xf32> to vector<8x8xbf16>
    %cst_35 = arith.constant dense<0.000000e+00> : vector<8x32xf32>
    %87 = tpu.matmul %86, %73, %cst_35 {dimension_numbers = #tpu.dot_dimension_numbers<[1], [0], [0], [1], [0, 0, 1, 1], [], []>} : vector<8x8xbf16>, vector<8x32xbf16>, vector<8x32xf32> -> vector<8x32xf32>
    %cst_36 = arith.constant 0.000000e+00 : f32
    %88 = vector.shape_cast %32 : vector<1x32xi1> to vector<1x32xi1>
    %89 = vector.broadcast %88 : vector<1x32xi1> to vector<8x32xi1>
    %90 = vector.broadcast %cst_36 : f32 to vector<8x32xf32>
    %91 = arith.select %89, %87, %90 : vector<8x32xi1>, vector<8x32xf32>
    %92 = arith.addf %74, %91 : vector<8x32xf32>
    %cst_37 = arith.constant dense<0.000000e+00> : vector<8x8xf32>
    %93 = tpu.matmul %57, %70, %cst_37 {dimension_numbers = #tpu.dot_dimension_numbers<[1], [1], [0], [0], [0, 0, 1, 0], [], []>} : vector<8x32xbf16>, vector<8x32xbf16>, vector<8x8xf32> -> vector<8x8xf32>
    %cst_38 = arith.constant dense<0xFF800000> : vector<8xf32>
    %94 = vector.multi_reduction <maximumf>, %93, %cst_38 [1] : vector<8x8xf32> to vector<8xf32>
    %95 = vector.shape_cast %94 : vector<8xf32> to vector<8x1xf32>
    %96 = vector.broadcast %95 : vector<8x1xf32> to vector<8x8xf32>
    %97 = arith.subf %93, %96 : vector<8x8xf32>
    %98 = math.exp %97 : vector<8x8xf32>
    %cst_39 = arith.constant dense<0.000000e+00> : vector<8xf32>
    %99 = vector.multi_reduction <add>, %98, %cst_39 [1] : vector<8x8xf32> to vector<8xf32>
    %100 = vector.shape_cast %99 : vector<8xf32> to vector<8x1xf32>
    %101 = tpu.reciprocal %100 {approx = true} : vector<8x1xf32> -> vector<8x1xf32>
    %102 = vector.broadcast %101 : vector<8x1xf32> to vector<8x8xf32>
    %103 = arith.mulf %98, %102 : vector<8x8xf32>
    %104 = arith.truncf %103 : vector<8x8xf32> to vector<8x8xbf16>
    %cst_40 = arith.constant dense<0.000000e+00> : vector<8x32xf32>
    %105 = tpu.matmul %104, %73, %cst_40 {dimension_numbers = #tpu.dot_dimension_numbers<[1], [0], [0], [1], [0, 0, 1, 1], [], []>} : vector<8x8xbf16>, vector<8x32xbf16>, vector<8x32xf32> -> vector<8x32xf32>
    %cst_41 = arith.constant 0.000000e+00 : f32
    %106 = vector.shape_cast %37 : vector<1x32xi1> to vector<1x32xi1>
    %107 = vector.broadcast %106 : vector<1x32xi1> to vector<8x32xi1>
    %108 = vector.broadcast %cst_41 : f32 to vector<8x32xf32>
    %109 = arith.select %107, %105, %108 : vector<8x32xi1>, vector<8x32xf32>
    %110 = arith.addf %92, %109 : vector<8x32xf32>
    %cst_42 = arith.constant dense<0.000000e+00> : vector<8x8xf32>
    %111 = tpu.matmul %62, %70, %cst_42 {dimension_numbers = #tpu.dot_dimension_numbers<[1], [1], [0], [0], [0, 0, 1, 0], [], []>} : vector<8x32xbf16>, vector<8x32xbf16>, vector<8x8xf32> -> vector<8x8xf32>
    %cst_43 = arith.constant dense<0xFF800000> : vector<8xf32>
    %112 = vector.multi_reduction <maximumf>, %111, %cst_43 [1] : vector<8x8xf32> to vector<8xf32>
    %113 = vector.shape_cast %112 : vector<8xf32> to vector<8x1xf32>
    %114 = vector.broadcast %113 : vector<8x1xf32> to vector<8x8xf32>
    %115 = arith.subf %111, %114 : vector<8x8xf32>
    %116 = math.exp %115 : vector<8x8xf32>
    %cst_44 = arith.constant dense<0.000000e+00> : vector<8xf32>
    %117 = vector.multi_reduction <add>, %116, %cst_44 [1] : vector<8x8xf32> to vector<8xf32>
    %118 = vector.shape_cast %117 : vector<8xf32> to vector<8x1xf32>
    %119 = tpu.reciprocal %118 {approx = true} : vector<8x1xf32> -> vector<8x1xf32>
    %120 = vector.broadcast %119 : vector<8x1xf32> to vector<8x8xf32>
    %121 = arith.mulf %116, %120 : vector<8x8xf32>
    %122 = arith.truncf %121 : vector<8x8xf32> to vector<8x8xbf16>
    %cst_45 = arith.constant dense<0.000000e+00> : vector<8x32xf32>
    %123 = tpu.matmul %122, %73, %cst_45 {dimension_numbers = #tpu.dot_dimension_numbers<[1], [0], [0], [1], [0, 0, 1, 1], [], []>} : vector<8x8xbf16>, vector<8x32xbf16>, vector<8x32xf32> -> vector<8x32xf32>
    %cst_46 = arith.constant 0.000000e+00 : f32
    %124 = vector.shape_cast %42 : vector<1x32xi1> to vector<1x32xi1>
    %125 = vector.broadcast %124 : vector<1x32xi1> to vector<8x32xi1>
    %126 = vector.broadcast %cst_46 : f32 to vector<8x32xf32>
    %127 = arith.select %125, %123, %126 : vector<8x32xi1>, vector<8x32xf32>
    %128 = arith.addf %110, %127 : vector<8x32xf32>
    %cst_47 = arith.constant dense<0.000000e+00> : vector<8x8xf32>
    %129 = tpu.matmul %67, %70, %cst_47 {dimension_numbers = #tpu.dot_dimension_numbers<[1], [1], [0], [0], [0, 0, 1, 0], [], []>} : vector<8x32xbf16>, vector<8x32xbf16>, vector<8x8xf32> -> vector<8x8xf32>
    %cst_48 = arith.constant dense<0xFF800000> : vector<8xf32>
    %130 = vector.multi_reduction <maximumf>, %129, %cst_48 [1] : vector<8x8xf32> to vector<8xf32>
    %131 = vector.shape_cast %130 : vector<8xf32> to vector<8x1xf32>
    %132 = vector.broadcast %131 : vector<8x1xf32> to vector<8x8xf32>
    %133 = arith.subf %129, %132 : vector<8x8xf32>
    %134 = math.exp %133 : vector<8x8xf32>
    %cst_49 = arith.constant dense<0.000000e+00> : vector<8xf32>
    %135 = vector.multi_reduction <add>, %134, %cst_49 [1] : vector<8x8xf32> to vector<8xf32>
    %136 = vector.shape_cast %135 : vector<8xf32> to vector<8x1xf32>
    %137 = tpu.reciprocal %136 {approx = true} : vector<8x1xf32> -> vector<8x1xf32>
    %138 = vector.broadcast %137 : vector<8x1xf32> to vector<8x8xf32>
    %139 = arith.mulf %134, %138 : vector<8x8xf32>
    %140 = arith.truncf %139 : vector<8x8xf32> to vector<8x8xbf16>
    %cst_50 = arith.constant dense<0.000000e+00> : vector<8x32xf32>
    %141 = tpu.matmul %140, %73, %cst_50 {dimension_numbers = #tpu.dot_dimension_numbers<[1], [0], [0], [1], [0, 0, 1, 1], [], []>} : vector<8x8xbf16>, vector<8x32xbf16>, vector<8x32xf32> -> vector<8x32xf32>
    %cst_51 = arith.constant 0.000000e+00 : f32
    %142 = vector.shape_cast %47 : vector<1x32xi1> to vector<1x32xi1>
    %143 = vector.broadcast %142 : vector<1x32xi1> to vector<8x32xi1>
    %144 = vector.broadcast %cst_51 : f32 to vector<8x32xf32>
    %145 = arith.select %143, %141, %144 : vector<8x32xi1>, vector<8x32xf32>
    %146 = arith.addf %128, %145 : vector<8x32xf32>
    %147 = arith.addf %16, %146 : vector<8x32xf32>
    %148 = vector.extract_strided_slice %25 {offsets = [1, 0, 0], sizes = [1, 8, 32], strides = [1, 1, 1]} : vector<2x8x32xf32> to vector<1x8x32xf32>
    %149 = vector.shape_cast %148 : vector<1x8x32xf32> to vector<8x32xf32>
    %150 = arith.truncf %149 : vector<8x32xf32> to vector<8x32xbf16>
    %151 = vector.extract_strided_slice %26 {offsets = [1, 0, 0], sizes = [1, 8, 32], strides = [1, 1, 1]} : vector<2x8x32xf32> to vector<1x8x32xf32>
    %152 = vector.shape_cast %151 : vector<1x8x32xf32> to vector<8x32xf32>
    %153 = arith.truncf %152 : vector<8x32xf32> to vector<8x32xbf16>
    %cst_52 = arith.constant 0.000000e+00 : f32
    %154 = vector.broadcast %cst_52 : f32 to vector<8x32xf32>
    %cst_53 = arith.constant dense<0.000000e+00> : vector<8x8xf32>
    %155 = tpu.matmul %52, %150, %cst_53 {dimension_numbers = #tpu.dot_dimension_numbers<[1], [1], [0], [0], [0, 0, 1, 0], [], []>} : vector<8x32xbf16>, vector<8x32xbf16>, vector<8x8xf32> -> vector<8x8xf32>
    %cst_54 = arith.constant dense<0xFF800000> : vector<8xf32>
    %156 = vector.multi_reduction <maximumf>, %155, %cst_54 [1] : vector<8x8xf32> to vector<8xf32>
    %157 = vector.shape_cast %156 : vector<8xf32> to vector<8x1xf32>
    %158 = vector.broadcast %157 : vector<8x1xf32> to vector<8x8xf32>
    %159 = arith.subf %155, %158 : vector<8x8xf32>
    %160 = math.exp %159 : vector<8x8xf32>
    %cst_55 = arith.constant dense<0.000000e+00> : vector<8xf32>
    %161 = vector.multi_reduction <add>, %160, %cst_55 [1] : vector<8x8xf32> to vector<8xf32>
    %162 = vector.shape_cast %161 : vector<8xf32> to vector<8x1xf32>
    %163 = tpu.reciprocal %162 {approx = true} : vector<8x1xf32> -> vector<8x1xf32>
    %164 = vector.broadcast %163 : vector<8x1xf32> to vector<8x8xf32>
    %165 = arith.mulf %160, %164 : vector<8x8xf32>
    %166 = arith.truncf %165 : vector<8x8xf32> to vector<8x8xbf16>
    %cst_56 = arith.constant dense<0.000000e+00> : vector<8x32xf32>
    %167 = tpu.matmul %166, %153, %cst_56 {dimension_numbers = #tpu.dot_dimension_numbers<[1], [0], [0], [1], [0, 0, 1, 1], [], []>} : vector<8x8xbf16>, vector<8x32xbf16>, vector<8x32xf32> -> vector<8x32xf32>
    %cst_57 = arith.constant 0.000000e+00 : f32
    %168 = vector.shape_cast %32 : vector<1x32xi1> to vector<1x32xi1>
    %169 = vector.broadcast %168 : vector<1x32xi1> to vector<8x32xi1>
    %170 = vector.broadcast %cst_57 : f32 to vector<8x32xf32>
    %171 = arith.select %169, %167, %170 : vector<8x32xi1>, vector<8x32xf32>
    %172 = arith.addf %154, %171 : vector<8x32xf32>
    %cst_58 = arith.constant dense<0.000000e+00> : vector<8x8xf32>
    %173 = tpu.matmul %57, %150, %cst_58 {dimension_numbers = #tpu.dot_dimension_numbers<[1], [1], [0], [0], [0, 0, 1, 0], [], []>} : vector<8x32xbf16>, vector<8x32xbf16>, vector<8x8xf32> -> vector<8x8xf32>
    %cst_59 = arith.constant dense<0xFF800000> : vector<8xf32>
    %174 = vector.multi_reduction <maximumf>, %173, %cst_59 [1] : vector<8x8xf32> to vector<8xf32>
    %175 = vector.shape_cast %174 : vector<8xf32> to vector<8x1xf32>
    %176 = vector.broadcast %175 : vector<8x1xf32> to vector<8x8xf32>
    %177 = arith.subf %173, %176 : vector<8x8xf32>
    %178 = math.exp %177 : vector<8x8xf32>
    %cst_60 = arith.constant dense<0.000000e+00> : vector<8xf32>
    %179 = vector.multi_reduction <add>, %178, %cst_60 [1] : vector<8x8xf32> to vector<8xf32>
    %180 = vector.shape_cast %179 : vector<8xf32> to vector<8x1xf32>
    %181 = tpu.reciprocal %180 {approx = true} : vector<8x1xf32> -> vector<8x1xf32>
    %182 = vector.broadcast %181 : vector<8x1xf32> to vector<8x8xf32>
    %183 = arith.mulf %178, %182 : vector<8x8xf32>
    %184 = arith.truncf %183 : vector<8x8xf32> to vector<8x8xbf16>
    %cst_61 = arith.constant dense<0.000000e+00> : vector<8x32xf32>
    %185 = tpu.matmul %184, %153, %cst_61 {dimension_numbers = #tpu.dot_dimension_numbers<[1], [0], [0], [1], [0, 0, 1, 1], [], []>} : vector<8x8xbf16>, vector<8x32xbf16>, vector<8x32xf32> -> vector<8x32xf32>
    %cst_62 = arith.constant 0.000000e+00 : f32
    %186 = vector.shape_cast %37 : vector<1x32xi1> to vector<1x32xi1>
    %187 = vector.broadcast %186 : vector<1x32xi1> to vector<8x32xi1>
    %188 = vector.broadcast %cst_62 : f32 to vector<8x32xf32>
    %189 = arith.select %187, %185, %188 : vector<8x32xi1>, vector<8x32xf32>
    %190 = arith.addf %172, %189 : vector<8x32xf32>
    %cst_63 = arith.constant dense<0.000000e+00> : vector<8x8xf32>
    %191 = tpu.matmul %62, %150, %cst_63 {dimension_numbers = #tpu.dot_dimension_numbers<[1], [1], [0], [0], [0, 0, 1, 0], [], []>} : vector<8x32xbf16>, vector<8x32xbf16>, vector<8x8xf32> -> vector<8x8xf32>
    %cst_64 = arith.constant dense<0xFF800000> : vector<8xf32>
    %192 = vector.multi_reduction <maximumf>, %191, %cst_64 [1] : vector<8x8xf32> to vector<8xf32>
    %193 = vector.shape_cast %192 : vector<8xf32> to vector<8x1xf32>
    %194 = vector.broadcast %193 : vector<8x1xf32> to vector<8x8xf32>
    %195 = arith.subf %191, %194 : vector<8x8xf32>
    %196 = math.exp %195 : vector<8x8xf32>
    %cst_65 = arith.constant dense<0.000000e+00> : vector<8xf32>
    %197 = vector.multi_reduction <add>, %196, %cst_65 [1] : vector<8x8xf32> to vector<8xf32>
    %198 = vector.shape_cast %197 : vector<8xf32> to vector<8x1xf32>
    %199 = tpu.reciprocal %198 {approx = true} : vector<8x1xf32> -> vector<8x1xf32>
    %200 = vector.broadcast %199 : vector<8x1xf32> to vector<8x8xf32>
    %201 = arith.mulf %196, %200 : vector<8x8xf32>
    %202 = arith.truncf %201 : vector<8x8xf32> to vector<8x8xbf16>
    %cst_66 = arith.constant dense<0.000000e+00> : vector<8x32xf32>
    %203 = tpu.matmul %202, %153, %cst_66 {dimension_numbers = #tpu.dot_dimension_numbers<[1], [0], [0], [1], [0, 0, 1, 1], [], []>} : vector<8x8xbf16>, vector<8x32xbf16>, vector<8x32xf32> -> vector<8x32xf32>
    %cst_67 = arith.constant 0.000000e+00 : f32
    %204 = vector.shape_cast %42 : vector<1x32xi1> to vector<1x32xi1>
    %205 = vector.broadcast %204 : vector<1x32xi1> to vector<8x32xi1>
    %206 = vector.broadcast %cst_67 : f32 to vector<8x32xf32>
    %207 = arith.select %205, %203, %206 : vector<8x32xi1>, vector<8x32xf32>
    %208 = arith.addf %190, %207 : vector<8x32xf32>
    %cst_68 = arith.constant dense<0.000000e+00> : vector<8x8xf32>
    %209 = tpu.matmul %67, %150, %cst_68 {dimension_numbers = #tpu.dot_dimension_numbers<[1], [1], [0], [0], [0, 0, 1, 0], [], []>} : vector<8x32xbf16>, vector<8x32xbf16>, vector<8x8xf32> -> vector<8x8xf32>
    %cst_69 = arith.constant dense<0xFF800000> : vector<8xf32>
    %210 = vector.multi_reduction <maximumf>, %209, %cst_69 [1] : vector<8x8xf32> to vector<8xf32>
    %211 = vector.shape_cast %210 : vector<8xf32> to vector<8x1xf32>
    %212 = vector.broadcast %211 : vector<8x1xf32> to vector<8x8xf32>
    %213 = arith.subf %209, %212 : vector<8x8xf32>
    %214 = math.exp %213 : vector<8x8xf32>
    %cst_70 = arith.constant dense<0.000000e+00> : vector<8xf32>
    %215 = vector.multi_reduction <add>, %214, %cst_70 [1] : vector<8x8xf32> to vector<8xf32>
    %216 = vector.shape_cast %215 : vector<8xf32> to vector<8x1xf32>
    %217 = tpu.reciprocal %216 {approx = true} : vector<8x1xf32> -> vector<8x1xf32>
    %218 = vector.broadcast %217 : vector<8x1xf32> to vector<8x8xf32>
    %219 = arith.mulf %214, %218 : vector<8x8xf32>
    %220 = arith.truncf %219 : vector<8x8xf32> to vector<8x8xbf16>
    %cst_71 = arith.constant dense<0.000000e+00> : vector<8x32xf32>
    %221 = tpu.matmul %220, %153, %cst_71 {dimension_numbers = #tpu.dot_dimension_numbers<[1], [0], [0], [1], [0, 0, 1, 1], [], []>} : vector<8x8xbf16>, vector<8x32xbf16>, vector<8x32xf32> -> vector<8x32xf32>
    %cst_72 = arith.constant 0.000000e+00 : f32
    %222 = vector.shape_cast %47 : vector<1x32xi1> to vector<1x32xi1>
    %223 = vector.broadcast %222 : vector<1x32xi1> to vector<8x32xi1>
    %224 = vector.broadcast %cst_72 : f32 to vector<8x32xf32>
    %225 = arith.select %223, %221, %224 : vector<8x32xi1>, vector<8x32xf32>
    %226 = arith.addf %208, %225 : vector<8x32xf32>
    %227 = arith.addf %16, %226 : vector<8x32xf32>
    %228 = tpu.concatenate %147, %227 in 0 : vector<8x32xf32>, vector<8x32xf32> -> vector<16x32xf32>
    %229 = arith.truncf %228 : vector<16x32xf32> to vector<16x32xbf16>
    %cst_73 = arith.constant dense<0.000000e+00> : vector<16x32xf32>
    %230 = tpu.matmul %229, %8, %cst_73 {dimension_numbers = #tpu.dot_dimension_numbers<[1], [0], [0], [1], [0, 0, 1, 1], [], []>} : vector<16x32xbf16>, vector<32x32xbf16>, vector<16x32xf32> -> vector<16x32xf32>
    %231 = vector.broadcast %9 : vector<1x32xf32> to vector<16x32xf32>
    %232 = arith.addf %230, %231 : vector<16x32xf32>
    %cst_74 = arith.constant 0.000000e+00 : f32
    %233 = vector.broadcast %cst_74 : f32 to vector<16x32xf32>
    %234 = arith.maximumf %232, %233 : vector<16x32xf32>
    %235 = arith.addf %228, %234 : vector<16x32xf32>
    %236 = vector.shape_cast %235 : vector<16x32xf32> to vector<2x8x32xf32>
    %c0_75 = arith.constant 0 : index
    %c0_76 = arith.constant 0 : index
    %237 = vector.load %arg11[%c0_75, %c0_76] : memref<4x32xbf16, #tpu.memory_space<vmem>>, vector<4x32xbf16>
    %c0_77 = arith.constant 0 : index
    %c0_78 = arith.constant 0 : index
    %238 = vector.load %arg12[%c0_77, %c0_78] : memref<1x32xf32, #tpu.memory_space<vmem>>, vector<1x32xf32>
    %c0_79 = arith.constant 0 : index
    %c0_80 = arith.constant 0 : index
    %239 = vector.load %arg13[%c0_79, %c0_80] : memref<32x32xbf16, #tpu.memory_space<vmem>>, vector<32x32xbf16>
    %c0_81 = arith.constant 0 : index
    %c0_82 = arith.constant 0 : index
    %240 = vector.load %arg14[%c0_81, %c0_82] : memref<1x32xf32, #tpu.memory_space<vmem>>, vector<1x32xf32>
    %c0_83 = arith.constant 0 : index
    %c0_84 = arith.constant 0 : index
    %241 = vector.load %arg15[%c0_83, %c0_84] : memref<32x32xbf16, #tpu.memory_space<vmem>>, vector<32x32xbf16>
    %c0_85 = arith.constant 0 : index
    %c0_86 = arith.constant 0 : index
    %242 = vector.load %arg16[%c0_85, %c0_86] : memref<1x32xf32, #tpu.memory_space<vmem>>, vector<1x32xf32>
    %c0_87 = arith.constant 0 : index
    %c0_88 = arith.constant 0 : index
    %243 = vector.load %arg17[%c0_87, %c0_88] : memref<32x32xbf16, #tpu.memory_space<vmem>>, vector<32x32xbf16>
    %c0_89 = arith.constant 0 : index
    %c0_90 = arith.constant 0 : index
    %244 = vector.load %arg18[%c0_89, %c0_90] : memref<1x32xf32, #tpu.memory_space<vmem>>, vector<1x32xf32>
    %245 = vector.shape_cast %0 : vector<2x8x4xf32> to vector<16x4xf32>
    %246 = arith.truncf %245 : vector<16x4xf32> to vector<16x4xbf16>
    %247 = vector.shape_cast %236 : vector<2x8x32xf32> to vector<16x32xf32>
    %248 = arith.truncf %247 : vector<16x32xf32> to vector<16x32xbf16>
    %cst_91 = arith.constant dense<0.000000e+00> : vector<16x32xf32>
    %249 = tpu.matmul %246, %237, %cst_91 {dimension_numbers = #tpu.dot_dimension_numbers<[1], [0], [0], [1], [0, 0, 1, 1], [], []>} : vector<16x4xbf16>, vector<4x32xbf16>, vector<16x32xf32> -> vector<16x32xf32>
    %250 = vector.broadcast %238 : vector<1x32xf32> to vector<16x32xf32>
    %251 = arith.addf %249, %250 : vector<16x32xf32>
    %cst_92 = arith.constant dense<0.000000e+00> : vector<16x32xf32>
    %252 = tpu.matmul %248, %239, %cst_92 {dimension_numbers = #tpu.dot_dimension_numbers<[1], [0], [0], [1], [0, 0, 1, 1], [], []>} : vector<16x32xbf16>, vector<32x32xbf16>, vector<16x32xf32> -> vector<16x32xf32>
    %253 = vector.broadcast %240 : vector<1x32xf32> to vector<16x32xf32>
    %254 = arith.addf %252, %253 : vector<16x32xf32>
    %cst_93 = arith.constant 0.176776692 : f32
    %255 = vector.broadcast %cst_93 : f32 to vector<16x32xf32>
    %256 = arith.mulf %254, %255 : vector<16x32xf32>
    %cst_94 = arith.constant dense<0.000000e+00> : vector<16x32xf32>
    %257 = tpu.matmul %248, %241, %cst_94 {dimension_numbers = #tpu.dot_dimension_numbers<[1], [0], [0], [1], [0, 0, 1, 1], [], []>} : vector<16x32xbf16>, vector<32x32xbf16>, vector<16x32xf32> -> vector<16x32xf32>
    %258 = vector.broadcast %242 : vector<1x32xf32> to vector<16x32xf32>
    %259 = arith.addf %257, %258 : vector<16x32xf32>
    %260 = vector.shape_cast %256 : vector<16x32xf32> to vector<2x8x32xf32>
    %261 = vector.shape_cast %259 : vector<16x32xf32> to vector<2x8x32xf32>
    %262 = tpu.iota {dimensions = array<i32: 1>} : vector<1x32xi32>
    %c0_i32_95 = arith.constant 0 : i32
    %263 = vector.broadcast %c0_i32_95 : i32 to vector<1x32xi32>
    %264 = arith.cmpi sge, %262, %263 : vector<1x32xi32>
    %c8_i32_96 = arith.constant 8 : i32
    %265 = vector.broadcast %c8_i32_96 : i32 to vector<1x32xi32>
    %266 = arith.cmpi slt, %262, %265 : vector<1x32xi32>
    %267 = arith.andi %264, %266 : vector<1x32xi1>
    %c8_i32_97 = arith.constant 8 : i32
    %268 = vector.broadcast %c8_i32_97 : i32 to vector<1x32xi32>
    %269 = arith.cmpi sge, %262, %268 : vector<1x32xi32>
    %c16_i32_98 = arith.constant 16 : i32
    %270 = vector.broadcast %c16_i32_98 : i32 to vector<1x32xi32>
    %271 = arith.cmpi slt, %262, %270 : vector<1x32xi32>
    %272 = arith.andi %269, %271 : vector<1x32xi1>
    %c16_i32_99 = arith.constant 16 : i32
    %273 = vector.broadcast %c16_i32_99 : i32 to vector<1x32xi32>
    %274 = arith.cmpi sge, %262, %273 : vector<1x32xi32>
    %c24_i32_100 = arith.constant 24 : i32
    %275 = vector.broadcast %c24_i32_100 : i32 to vector<1x32xi32>
    %276 = arith.cmpi slt, %262, %275 : vector<1x32xi32>
    %277 = arith.andi %274, %276 : vector<1x32xi1>
    %c24_i32_101 = arith.constant 24 : i32
    %278 = vector.broadcast %c24_i32_101 : i32 to vector<1x32xi32>
    %279 = arith.cmpi sge, %262, %278 : vector<1x32xi32>
    %c32_i32_102 = arith.constant 32 : i32
    %280 = vector.broadcast %c32_i32_102 : i32 to vector<1x32xi32>
    %281 = arith.cmpi slt, %262, %280 : vector<1x32xi32>
    %282 = arith.andi %279, %281 : vector<1x32xi1>
    %283 = vector.shape_cast %251 : vector<16x32xf32> to vector<2x8x32xf32>
    %284 = vector.extract_strided_slice %283 {offsets = [0, 0, 0], sizes = [1, 8, 32], strides = [1, 1, 1]} : vector<2x8x32xf32> to vector<1x8x32xf32>
    %285 = vector.shape_cast %284 : vector<1x8x32xf32> to vector<8x32xf32>
    %286 = vector.extract_strided_slice %260 {offsets = [0, 0, 0], sizes = [1, 8, 32], strides = [1, 1, 1]} : vector<2x8x32xf32> to vector<1x8x32xf32>
    %287 = vector.shape_cast %286 : vector<1x8x32xf32> to vector<8x32xf32>
    %288 = arith.truncf %287 : vector<8x32xf32> to vector<8x32xbf16>
    %289 = vector.extract_strided_slice %261 {offsets = [0, 0, 0], sizes = [1, 8, 32], strides = [1, 1, 1]} : vector<2x8x32xf32> to vector<1x8x32xf32>
    %290 = vector.shape_cast %289 : vector<1x8x32xf32> to vector<8x32xf32>
    %291 = arith.truncf %290 : vector<8x32xf32> to vector<8x32xbf16>
    %cst_103 = arith.constant 0.000000e+00 : f32
    %292 = vector.broadcast %cst_103 : f32 to vector<8x32xf32>
    %cst_104 = arith.constant 0.000000e+00 : f32
    %293 = vector.shape_cast %267 : vector<1x32xi1> to vector<1x32xi1>
    %294 = vector.broadcast %293 : vector<1x32xi1> to vector<8x32xi1>
    %295 = vector.broadcast %cst_104 : f32 to vector<8x32xf32>
    %296 = arith.select %294, %285, %295 : vector<8x32xi1>, vector<8x32xf32>
    %297 = arith.truncf %296 : vector<8x32xf32> to vector<8x32xbf16>
    %cst_105 = arith.constant dense<0.000000e+00> : vector<8x8xf32>
    %298 = tpu.matmul %297, %288, %cst_105 {dimension_numbers = #tpu.dot_dimension_numbers<[1], [1], [0], [0], [0, 0, 1, 0], [], []>} : vector<8x32xbf16>, vector<8x32xbf16>, vector<8x8xf32> -> vector<8x8xf32>
    %cst_106 = arith.constant dense<0xFF800000> : vector<8xf32>
    %299 = vector.multi_reduction <maximumf>, %298, %cst_106 [1] : vector<8x8xf32> to vector<8xf32>
    %300 = vector.shape_cast %299 : vector<8xf32> to vector<8x1xf32>
    %301 = vector.broadcast %300 : vector<8x1xf32> to vector<8x8xf32>
    %302 = arith.subf %298, %301 : vector<8x8xf32>
    %303 = math.exp %302 : vector<8x8xf32>
    %cst_107 = arith.constant dense<0.000000e+00> : vector<8xf32>
    %304 = vector.multi_reduction <add>, %303, %cst_107 [1] : vector<8x8xf32> to vector<8xf32>
    %305 = vector.shape_cast %304 : vector<8xf32> to vector<8x1xf32>
    %306 = tpu.reciprocal %305 {approx = true} : vector<8x1xf32> -> vector<8x1xf32>
    %307 = vector.broadcast %306 : vector<8x1xf32> to vector<8x8xf32>
    %308 = arith.mulf %303, %307 : vector<8x8xf32>
    %309 = arith.truncf %308 : vector<8x8xf32> to vector<8x8xbf16>
    %cst_108 = arith.constant dense<0.000000e+00> : vector<8x32xf32>
    %310 = tpu.matmul %309, %291, %cst_108 {dimension_numbers = #tpu.dot_dimension_numbers<[1], [0], [0], [1], [0, 0, 1, 1], [], []>} : vector<8x8xbf16>, vector<8x32xbf16>, vector<8x32xf32> -> vector<8x32xf32>
    %cst_109 = arith.constant 0.000000e+00 : f32
    %311 = vector.shape_cast %267 : vector<1x32xi1> to vector<1x32xi1>
    %312 = vector.broadcast %311 : vector<1x32xi1> to vector<8x32xi1>
    %313 = vector.broadcast %cst_109 : f32 to vector<8x32xf32>
    %314 = arith.select %312, %310, %313 : vector<8x32xi1>, vector<8x32xf32>
    %315 = arith.addf %292, %314 : vector<8x32xf32>
    %cst_110 = arith.constant 0.000000e+00 : f32
    %316 = vector.shape_cast %272 : vector<1x32xi1> to vector<1x32xi1>
    %317 = vector.broadcast %316 : vector<1x32xi1> to vector<8x32xi1>
    %318 = vector.broadcast %cst_110 : f32 to vector<8x32xf32>
    %319 = arith.select %317, %285, %318 : vector<8x32xi1>, vector<8x32xf32>
    %320 = arith.truncf %319 : vector<8x32xf32> to vector<8x32xbf16>
    %cst_111 = arith.constant dense<0.000000e+00> : vector<8x8xf32>
    %321 = tpu.matmul %320, %288, %cst_111 {dimension_numbers = #tpu.dot_dimension_numbers<[1], [1], [0], [0], [0, 0, 1, 0], [], []>} : vector<8x32xbf16>, vector<8x32xbf16>, vector<8x8xf32> -> vector<8x8xf32>
    %cst_112 = arith.constant dense<0xFF800000> : vector<8xf32>
    %322 = vector.multi_reduction <maximumf>, %321, %cst_112 [1] : vector<8x8xf32> to vector<8xf32>
    %323 = vector.shape_cast %322 : vector<8xf32> to vector<8x1xf32>
    %324 = vector.broadcast %323 : vector<8x1xf32> to vector<8x8xf32>
    %325 = arith.subf %321, %324 : vector<8x8xf32>
    %326 = math.exp %325 : vector<8x8xf32>
    %cst_113 = arith.constant dense<0.000000e+00> : vector<8xf32>
    %327 = vector.multi_reduction <add>, %326, %cst_113 [1] : vector<8x8xf32> to vector<8xf32>
    %328 = vector.shape_cast %327 : vector<8xf32> to vector<8x1xf32>
    %329 = tpu.reciprocal %328 {approx = true} : vector<8x1xf32> -> vector<8x1xf32>
    %330 = vector.broadcast %329 : vector<8x1xf32> to vector<8x8xf32>
    %331 = arith.mulf %326, %330 : vector<8x8xf32>
    %332 = arith.truncf %331 : vector<8x8xf32> to vector<8x8xbf16>
    %cst_114 = arith.constant dense<0.000000e+00> : vector<8x32xf32>
    %333 = tpu.matmul %332, %291, %cst_114 {dimension_numbers = #tpu.dot_dimension_numbers<[1], [0], [0], [1], [0, 0, 1, 1], [], []>} : vector<8x8xbf16>, vector<8x32xbf16>, vector<8x32xf32> -> vector<8x32xf32>
    %cst_115 = arith.constant 0.000000e+00 : f32
    %334 = vector.shape_cast %272 : vector<1x32xi1> to vector<1x32xi1>
    %335 = vector.broadcast %334 : vector<1x32xi1> to vector<8x32xi1>
    %336 = vector.broadcast %cst_115 : f32 to vector<8x32xf32>
    %337 = arith.select %335, %333, %336 : vector<8x32xi1>, vector<8x32xf32>
    %338 = arith.addf %315, %337 : vector<8x32xf32>
    %cst_116 = arith.constant 0.000000e+00 : f32
    %339 = vector.shape_cast %277 : vector<1x32xi1> to vector<1x32xi1>
    %340 = vector.broadcast %339 : vector<1x32xi1> to vector<8x32xi1>
    %341 = vector.broadcast %cst_116 : f32 to vector<8x32xf32>
    %342 = arith.select %340, %285, %341 : vector<8x32xi1>, vector<8x32xf32>
    %343 = arith.truncf %342 : vector<8x32xf32> to vector<8x32xbf16>
    %cst_117 = arith.constant dense<0.000000e+00> : vector<8x8xf32>
    %344 = tpu.matmul %343, %288, %cst_117 {dimension_numbers = #tpu.dot_dimension_numbers<[1], [1], [0], [0], [0, 0, 1, 0], [], []>} : vector<8x32xbf16>, vector<8x32xbf16>, vector<8x8xf32> -> vector<8x8xf32>
    %cst_118 = arith.constant dense<0xFF800000> : vector<8xf32>
    %345 = vector.multi_reduction <maximumf>, %344, %cst_118 [1] : vector<8x8xf32> to vector<8xf32>
    %346 = vector.shape_cast %345 : vector<8xf32> to vector<8x1xf32>
    %347 = vector.broadcast %346 : vector<8x1xf32> to vector<8x8xf32>
    %348 = arith.subf %344, %347 : vector<8x8xf32>
    %349 = math.exp %348 : vector<8x8xf32>
    %cst_119 = arith.constant dense<0.000000e+00> : vector<8xf32>
    %350 = vector.multi_reduction <add>, %349, %cst_119 [1] : vector<8x8xf32> to vector<8xf32>
    %351 = vector.shape_cast %350 : vector<8xf32> to vector<8x1xf32>
    %352 = tpu.reciprocal %351 {approx = true} : vector<8x1xf32> -> vector<8x1xf32>
    %353 = vector.broadcast %352 : vector<8x1xf32> to vector<8x8xf32>
    %354 = arith.mulf %349, %353 : vector<8x8xf32>
    %355 = arith.truncf %354 : vector<8x8xf32> to vector<8x8xbf16>
    %cst_120 = arith.constant dense<0.000000e+00> : vector<8x32xf32>
    %356 = tpu.matmul %355, %291, %cst_120 {dimension_numbers = #tpu.dot_dimension_numbers<[1], [0], [0], [1], [0, 0, 1, 1], [], []>} : vector<8x8xbf16>, vector<8x32xbf16>, vector<8x32xf32> -> vector<8x32xf32>
    %cst_121 = arith.constant 0.000000e+00 : f32
    %357 = vector.shape_cast %277 : vector<1x32xi1> to vector<1x32xi1>
    %358 = vector.broadcast %357 : vector<1x32xi1> to vector<8x32xi1>
    %359 = vector.broadcast %cst_121 : f32 to vector<8x32xf32>
    %360 = arith.select %358, %356, %359 : vector<8x32xi1>, vector<8x32xf32>
    %361 = arith.addf %338, %360 : vector<8x32xf32>
    %cst_122 = arith.constant 0.000000e+00 : f32
    %362 = vector.shape_cast %282 : vector<1x32xi1> to vector<1x32xi1>
    %363 = vector.broadcast %362 : vector<1x32xi1> to vector<8x32xi1>
    %364 = vector.broadcast %cst_122 : f32 to vector<8x32xf32>
    %365 = arith.select %363, %285, %364 : vector<8x32xi1>, vector<8x32xf32>
    %366 = arith.truncf %365 : vector<8x32xf32> to vector<8x32xbf16>
    %cst_123 = arith.constant dense<0.000000e+00> : vector<8x8xf32>
    %367 = tpu.matmul %366, %288, %cst_123 {dimension_numbers = #tpu.dot_dimension_numbers<[1], [1], [0], [0], [0, 0, 1, 0], [], []>} : vector<8x32xbf16>, vector<8x32xbf16>, vector<8x8xf32> -> vector<8x8xf32>
    %cst_124 = arith.constant dense<0xFF800000> : vector<8xf32>
    %368 = vector.multi_reduction <maximumf>, %367, %cst_124 [1] : vector<8x8xf32> to vector<8xf32>
    %369 = vector.shape_cast %368 : vector<8xf32> to vector<8x1xf32>
    %370 = vector.broadcast %369 : vector<8x1xf32> to vector<8x8xf32>
    %371 = arith.subf %367, %370 : vector<8x8xf32>
    %372 = math.exp %371 : vector<8x8xf32>
    %cst_125 = arith.constant dense<0.000000e+00> : vector<8xf32>
    %373 = vector.multi_reduction <add>, %372, %cst_125 [1] : vector<8x8xf32> to vector<8xf32>
    %374 = vector.shape_cast %373 : vector<8xf32> to vector<8x1xf32>
    %375 = tpu.reciprocal %374 {approx = true} : vector<8x1xf32> -> vector<8x1xf32>
    %376 = vector.broadcast %375 : vector<8x1xf32> to vector<8x8xf32>
    %377 = arith.mulf %372, %376 : vector<8x8xf32>
    %378 = arith.truncf %377 : vector<8x8xf32> to vector<8x8xbf16>
    %cst_126 = arith.constant dense<0.000000e+00> : vector<8x32xf32>
    %379 = tpu.matmul %378, %291, %cst_126 {dimension_numbers = #tpu.dot_dimension_numbers<[1], [0], [0], [1], [0, 0, 1, 1], [], []>} : vector<8x8xbf16>, vector<8x32xbf16>, vector<8x32xf32> -> vector<8x32xf32>
    %cst_127 = arith.constant 0.000000e+00 : f32
    %380 = vector.shape_cast %282 : vector<1x32xi1> to vector<1x32xi1>
    %381 = vector.broadcast %380 : vector<1x32xi1> to vector<8x32xi1>
    %382 = vector.broadcast %cst_127 : f32 to vector<8x32xf32>
    %383 = arith.select %381, %379, %382 : vector<8x32xi1>, vector<8x32xf32>
    %384 = arith.addf %361, %383 : vector<8x32xf32>
    %385 = arith.addf %285, %384 : vector<8x32xf32>
    %386 = vector.extract_strided_slice %283 {offsets = [1, 0, 0], sizes = [1, 8, 32], strides = [1, 1, 1]} : vector<2x8x32xf32> to vector<1x8x32xf32>
    %387 = vector.shape_cast %386 : vector<1x8x32xf32> to vector<8x32xf32>
    %388 = vector.extract_strided_slice %260 {offsets = [1, 0, 0], sizes = [1, 8, 32], strides = [1, 1, 1]} : vector<2x8x32xf32> to vector<1x8x32xf32>
    %389 = vector.shape_cast %388 : vector<1x8x32xf32> to vector<8x32xf32>
    %390 = arith.truncf %389 : vector<8x32xf32> to vector<8x32xbf16>
    %391 = vector.extract_strided_slice %261 {offsets = [1, 0, 0], sizes = [1, 8, 32], strides = [1, 1, 1]} : vector<2x8x32xf32> to vector<1x8x32xf32>
    %392 = vector.shape_cast %391 : vector<1x8x32xf32> to vector<8x32xf32>
    %393 = arith.truncf %392 : vector<8x32xf32> to vector<8x32xbf16>
    %cst_128 = arith.constant 0.000000e+00 : f32
    %394 = vector.broadcast %cst_128 : f32 to vector<8x32xf32>
    %cst_129 = arith.constant 0.000000e+00 : f32
    %395 = vector.shape_cast %267 : vector<1x32xi1> to vector<1x32xi1>
    %396 = vector.broadcast %395 : vector<1x32xi1> to vector<8x32xi1>
    %397 = vector.broadcast %cst_129 : f32 to vector<8x32xf32>
    %398 = arith.select %396, %387, %397 : vector<8x32xi1>, vector<8x32xf32>
    %399 = arith.truncf %398 : vector<8x32xf32> to vector<8x32xbf16>
    %cst_130 = arith.constant dense<0.000000e+00> : vector<8x8xf32>
    %400 = tpu.matmul %399, %390, %cst_130 {dimension_numbers = #tpu.dot_dimension_numbers<[1], [1], [0], [0], [0, 0, 1, 0], [], []>} : vector<8x32xbf16>, vector<8x32xbf16>, vector<8x8xf32> -> vector<8x8xf32>
    %cst_131 = arith.constant dense<0xFF800000> : vector<8xf32>
    %401 = vector.multi_reduction <maximumf>, %400, %cst_131 [1] : vector<8x8xf32> to vector<8xf32>
    %402 = vector.shape_cast %401 : vector<8xf32> to vector<8x1xf32>
    %403 = vector.broadcast %402 : vector<8x1xf32> to vector<8x8xf32>
    %404 = arith.subf %400, %403 : vector<8x8xf32>
    %405 = math.exp %404 : vector<8x8xf32>
    %cst_132 = arith.constant dense<0.000000e+00> : vector<8xf32>
    %406 = vector.multi_reduction <add>, %405, %cst_132 [1] : vector<8x8xf32> to vector<8xf32>
    %407 = vector.shape_cast %406 : vector<8xf32> to vector<8x1xf32>
    %408 = tpu.reciprocal %407 {approx = true} : vector<8x1xf32> -> vector<8x1xf32>
    %409 = vector.broadcast %408 : vector<8x1xf32> to vector<8x8xf32>
    %410 = arith.mulf %405, %409 : vector<8x8xf32>
    %411 = arith.truncf %410 : vector<8x8xf32> to vector<8x8xbf16>
    %cst_133 = arith.constant dense<0.000000e+00> : vector<8x32xf32>
    %412 = tpu.matmul %411, %393, %cst_133 {dimension_numbers = #tpu.dot_dimension_numbers<[1], [0], [0], [1], [0, 0, 1, 1], [], []>} : vector<8x8xbf16>, vector<8x32xbf16>, vector<8x32xf32> -> vector<8x32xf32>
    %cst_134 = arith.constant 0.000000e+00 : f32
    %413 = vector.shape_cast %267 : vector<1x32xi1> to vector<1x32xi1>
    %414 = vector.broadcast %413 : vector<1x32xi1> to vector<8x32xi1>
    %415 = vector.broadcast %cst_134 : f32 to vector<8x32xf32>
    %416 = arith.select %414, %412, %415 : vector<8x32xi1>, vector<8x32xf32>
    %417 = arith.addf %394, %416 : vector<8x32xf32>
    %cst_135 = arith.constant 0.000000e+00 : f32
    %418 = vector.shape_cast %272 : vector<1x32xi1> to vector<1x32xi1>
    %419 = vector.broadcast %418 : vector<1x32xi1> to vector<8x32xi1>
    %420 = vector.broadcast %cst_135 : f32 to vector<8x32xf32>
    %421 = arith.select %419, %387, %420 : vector<8x32xi1>, vector<8x32xf32>
    %422 = arith.truncf %421 : vector<8x32xf32> to vector<8x32xbf16>
    %cst_136 = arith.constant dense<0.000000e+00> : vector<8x8xf32>
    %423 = tpu.matmul %422, %390, %cst_136 {dimension_numbers = #tpu.dot_dimension_numbers<[1], [1], [0], [0], [0, 0, 1, 0], [], []>} : vector<8x32xbf16>, vector<8x32xbf16>, vector<8x8xf32> -> vector<8x8xf32>
    %cst_137 = arith.constant dense<0xFF800000> : vector<8xf32>
    %424 = vector.multi_reduction <maximumf>, %423, %cst_137 [1] : vector<8x8xf32> to vector<8xf32>
    %425 = vector.shape_cast %424 : vector<8xf32> to vector<8x1xf32>
    %426 = vector.broadcast %425 : vector<8x1xf32> to vector<8x8xf32>
    %427 = arith.subf %423, %426 : vector<8x8xf32>
    %428 = math.exp %427 : vector<8x8xf32>
    %cst_138 = arith.constant dense<0.000000e+00> : vector<8xf32>
    %429 = vector.multi_reduction <add>, %428, %cst_138 [1] : vector<8x8xf32> to vector<8xf32>
    %430 = vector.shape_cast %429 : vector<8xf32> to vector<8x1xf32>
    %431 = tpu.reciprocal %430 {approx = true} : vector<8x1xf32> -> vector<8x1xf32>
    %432 = vector.broadcast %431 : vector<8x1xf32> to vector<8x8xf32>
    %433 = arith.mulf %428, %432 : vector<8x8xf32>
    %434 = arith.truncf %433 : vector<8x8xf32> to vector<8x8xbf16>
    %cst_139 = arith.constant dense<0.000000e+00> : vector<8x32xf32>
    %435 = tpu.matmul %434, %393, %cst_139 {dimension_numbers = #tpu.dot_dimension_numbers<[1], [0], [0], [1], [0, 0, 1, 1], [], []>} : vector<8x8xbf16>, vector<8x32xbf16>, vector<8x32xf32> -> vector<8x32xf32>
    %cst_140 = arith.constant 0.000000e+00 : f32
    %436 = vector.shape_cast %272 : vector<1x32xi1> to vector<1x32xi1>
    %437 = vector.broadcast %436 : vector<1x32xi1> to vector<8x32xi1>
    %438 = vector.broadcast %cst_140 : f32 to vector<8x32xf32>
    %439 = arith.select %437, %435, %438 : vector<8x32xi1>, vector<8x32xf32>
    %440 = arith.addf %417, %439 : vector<8x32xf32>
    %cst_141 = arith.constant 0.000000e+00 : f32
    %441 = vector.shape_cast %277 : vector<1x32xi1> to vector<1x32xi1>
    %442 = vector.broadcast %441 : vector<1x32xi1> to vector<8x32xi1>
    %443 = vector.broadcast %cst_141 : f32 to vector<8x32xf32>
    %444 = arith.select %442, %387, %443 : vector<8x32xi1>, vector<8x32xf32>
    %445 = arith.truncf %444 : vector<8x32xf32> to vector<8x32xbf16>
    %cst_142 = arith.constant dense<0.000000e+00> : vector<8x8xf32>
    %446 = tpu.matmul %445, %390, %cst_142 {dimension_numbers = #tpu.dot_dimension_numbers<[1], [1], [0], [0], [0, 0, 1, 0], [], []>} : vector<8x32xbf16>, vector<8x32xbf16>, vector<8x8xf32> -> vector<8x8xf32>
    %cst_143 = arith.constant dense<0xFF800000> : vector<8xf32>
    %447 = vector.multi_reduction <maximumf>, %446, %cst_143 [1] : vector<8x8xf32> to vector<8xf32>
    %448 = vector.shape_cast %447 : vector<8xf32> to vector<8x1xf32>
    %449 = vector.broadcast %448 : vector<8x1xf32> to vector<8x8xf32>
    %450 = arith.subf %446, %449 : vector<8x8xf32>
    %451 = math.exp %450 : vector<8x8xf32>
    %cst_144 = arith.constant dense<0.000000e+00> : vector<8xf32>
    %452 = vector.multi_reduction <add>, %451, %cst_144 [1] : vector<8x8xf32> to vector<8xf32>
    %453 = vector.shape_cast %452 : vector<8xf32> to vector<8x1xf32>
    %454 = tpu.reciprocal %453 {approx = true} : vector<8x1xf32> -> vector<8x1xf32>
    %455 = vector.broadcast %454 : vector<8x1xf32> to vector<8x8xf32>
    %456 = arith.mulf %451, %455 : vector<8x8xf32>
    %457 = arith.truncf %456 : vector<8x8xf32> to vector<8x8xbf16>
    %cst_145 = arith.constant dense<0.000000e+00> : vector<8x32xf32>
    %458 = tpu.matmul %457, %393, %cst_145 {dimension_numbers = #tpu.dot_dimension_numbers<[1], [0], [0], [1], [0, 0, 1, 1], [], []>} : vector<8x8xbf16>, vector<8x32xbf16>, vector<8x32xf32> -> vector<8x32xf32>
    %cst_146 = arith.constant 0.000000e+00 : f32
    %459 = vector.shape_cast %277 : vector<1x32xi1> to vector<1x32xi1>
    %460 = vector.broadcast %459 : vector<1x32xi1> to vector<8x32xi1>
    %461 = vector.broadcast %cst_146 : f32 to vector<8x32xf32>
    %462 = arith.select %460, %458, %461 : vector<8x32xi1>, vector<8x32xf32>
    %463 = arith.addf %440, %462 : vector<8x32xf32>
    %cst_147 = arith.constant 0.000000e+00 : f32
    %464 = vector.shape_cast %282 : vector<1x32xi1> to vector<1x32xi1>
    %465 = vector.broadcast %464 : vector<1x32xi1> to vector<8x32xi1>
    %466 = vector.broadcast %cst_147 : f32 to vector<8x32xf32>
    %467 = arith.select %465, %387, %466 : vector<8x32xi1>, vector<8x32xf32>
    %468 = arith.truncf %467 : vector<8x32xf32> to vector<8x32xbf16>
    %cst_148 = arith.constant dense<0.000000e+00> : vector<8x8xf32>
    %469 = tpu.matmul %468, %390, %cst_148 {dimension_numbers = #tpu.dot_dimension_numbers<[1], [1], [0], [0], [0, 0, 1, 0], [], []>} : vector<8x32xbf16>, vector<8x32xbf16>, vector<8x8xf32> -> vector<8x8xf32>
    %cst_149 = arith.constant dense<0xFF800000> : vector<8xf32>
    %470 = vector.multi_reduction <maximumf>, %469, %cst_149 [1] : vector<8x8xf32> to vector<8xf32>
    %471 = vector.shape_cast %470 : vector<8xf32> to vector<8x1xf32>
    %472 = vector.broadcast %471 : vector<8x1xf32> to vector<8x8xf32>
    %473 = arith.subf %469, %472 : vector<8x8xf32>
    %474 = math.exp %473 : vector<8x8xf32>
    %cst_150 = arith.constant dense<0.000000e+00> : vector<8xf32>
    %475 = vector.multi_reduction <add>, %474, %cst_150 [1] : vector<8x8xf32> to vector<8xf32>
    %476 = vector.shape_cast %475 : vector<8xf32> to vector<8x1xf32>
    %477 = tpu.reciprocal %476 {approx = true} : vector<8x1xf32> -> vector<8x1xf32>
    %478 = vector.broadcast %477 : vector<8x1xf32> to vector<8x8xf32>
    %479 = arith.mulf %474, %478 : vector<8x8xf32>
    %480 = arith.truncf %479 : vector<8x8xf32> to vector<8x8xbf16>
    %cst_151 = arith.constant dense<0.000000e+00> : vector<8x32xf32>
    %481 = tpu.matmul %480, %393, %cst_151 {dimension_numbers = #tpu.dot_dimension_numbers<[1], [0], [0], [1], [0, 0, 1, 1], [], []>} : vector<8x8xbf16>, vector<8x32xbf16>, vector<8x32xf32> -> vector<8x32xf32>
    %cst_152 = arith.constant 0.000000e+00 : f32
    %482 = vector.shape_cast %282 : vector<1x32xi1> to vector<1x32xi1>
    %483 = vector.broadcast %482 : vector<1x32xi1> to vector<8x32xi1>
    %484 = vector.broadcast %cst_152 : f32 to vector<8x32xf32>
    %485 = arith.select %483, %481, %484 : vector<8x32xi1>, vector<8x32xf32>
    %486 = arith.addf %463, %485 : vector<8x32xf32>
    %487 = arith.addf %387, %486 : vector<8x32xf32>
    %488 = tpu.concatenate %385, %487 in 0 : vector<8x32xf32>, vector<8x32xf32> -> vector<16x32xf32>
    %489 = arith.truncf %488 : vector<16x32xf32> to vector<16x32xbf16>
    %cst_153 = arith.constant dense<0.000000e+00> : vector<16x32xf32>
    %490 = tpu.matmul %489, %243, %cst_153 {dimension_numbers = #tpu.dot_dimension_numbers<[1], [0], [0], [1], [0, 0, 1, 1], [], []>} : vector<16x32xbf16>, vector<32x32xbf16>, vector<16x32xf32> -> vector<16x32xf32>
    %491 = vector.broadcast %244 : vector<1x32xf32> to vector<16x32xf32>
    %492 = arith.addf %490, %491 : vector<16x32xf32>
    %cst_154 = arith.constant 0.000000e+00 : f32
    %493 = vector.broadcast %cst_154 : f32 to vector<16x32xf32>
    %494 = arith.maximumf %492, %493 : vector<16x32xf32>
    %495 = arith.addf %488, %494 : vector<16x32xf32>
    %496 = vector.shape_cast %495 : vector<16x32xf32> to vector<2x8x32xf32>
    %c0_155 = arith.constant 0 : index
    %c0_156 = arith.constant 0 : index
    %c0_157 = arith.constant 0 : index
    %497 = vector.load %arg19[%c0_155, %c0_156, %c0_157] : memref<2x8x32xf32, #tpu.memory_space<vmem>>, vector<2x8x32xf32>
    tpu.vector_store %arg19[%c0_155, %c0_156, %c0_157], %496 {strides = array<i32>} : memref<2x8x32xf32, #tpu.memory_space<vmem>>, vector<2x8x32xf32>,
    return
  }
  func.func @transform_0(%arg0: i32) -> (i32, i32, i32) {
    %c0_i32 = arith.constant 0 : i32
    %c0_i32_0 = arith.constant 0 : i32
    %c0_i32_1 = arith.constant 0 : i32
    return %arg0, %c0_i32, %c0_i32_0 : i32, i32, i32
  }
  func.func @transform_1(%arg0: i32) -> (i32, i32, i32) {
    %c0_i32 = arith.constant 0 : i32
    %c0_i32_0 = arith.constant 0 : i32
    %c0_i32_1 = arith.constant 0 : i32
    %c0_i32_2 = arith.constant 0 : i32
    return %c0_i32, %c0_i32_0, %c0_i32_1 : i32, i32, i32
  }
  func.func @transform_2(%arg0: i32) -> (i32, i32) {
    %c0_i32 = arith.constant 0 : i32
    %c0_i32_0 = arith.constant 0 : i32
    %c0_i32_1 = arith.constant 0 : i32
    return %c0_i32, %c0_i32_0 : i32, i32
  }
  func.func @transform_3(%arg0: i32) -> (i32, i32) {
    %c0_i32 = arith.constant 0 : i32
    %c0_i32_0 = arith.constant 0 : i32
    %c0_i32_1 = arith.constant 0 : i32
    return %c0_i32, %c0_i32_0 : i32, i32
  }
  func.func @transform_4(%arg0: i32) -> (i32, i32) {
    %c0_i32 = arith.constant 0 : i32
    %c0_i32_0 = arith.constant 0 : i32
    %c0_i32_1 = arith.constant 0 : i32
    return %c0_i32, %c0_i32_0 : i32, i32
  }
  func.func @transform_5(%arg0: i32) -> (i32, i32) {
    %c0_i32 = arith.constant 0 : i32
    %c0_i32_0 = arith.constant 0 : i32
    %c0_i32_1 = arith.constant 0 : i32
    return %c0_i32, %c0_i32_0 : i32, i32
  }
  func.func @transform_6(%arg0: i32) -> (i32, i32) {
    %c0_i32 = arith.constant 0 : i32
    %c0_i32_0 = arith.constant 0 : i32
    %c0_i32_1 = arith.constant 0 : i32
    return %c0_i32, %c0_i32_0 : i32, i32
  }
  func.func @transform_7(%arg0: i32) -> (i32, i32) {
    %c0_i32 = arith.constant 0 : i32
    %c0_i32_0 = arith.constant 0 : i32
    %c0_i32_1 = arith.constant 0 : i32
    return %c0_i32, %c0_i32_0 : i32, i32
  }
  func.func @transform_8(%arg0: i32) -> (i32, i32) {
    %c0_i32 = arith.constant 0 : i32
    %c0_i32_0 = arith.constant 0 : i32
    %c0_i32_1 = arith.constant 0 : i32
    return %c0_i32, %c0_i32_0 : i32, i32
  }
  func.func @transform_9(%arg0: i32) -> (i32, i32) {
    %c0_i32 = arith.constant 0 : i32
    %c0_i32_0 = arith.constant 0 : i32
    %c0_i32_1 = arith.constant 0 : i32
    return %c0_i32, %c0_i32_0 : i32, i32
  }
  func.func @transform_10(%arg0: i32) -> (i32, i32) {
    %c0_i32 = arith.constant 0 : i32
    %c0_i32_0 = arith.constant 0 : i32
    %c0_i32_1 = arith.constant 0 : i32
    return %c0_i32, %c0_i32_0 : i32, i32
  }
  func.func @transform_11(%arg0: i32) -> (i32, i32) {
    %c0_i32 = arith.constant 0 : i32
    %c0_i32_0 = arith.constant 0 : i32
    %c0_i32_1 = arith.constant 0 : i32
    return %c0_i32, %c0_i32_0 : i32, i32
  }
  func.func @transform_12(%arg0: i32) -> (i32, i32) {
    %c0_i32 = arith.constant 0 : i32
    %c0_i32_0 = arith.constant 0 : i32
    %c0_i32_1 = arith.constant 0 : i32
    return %c0_i32, %c0_i32_0 : i32, i32
  }
  func.func @transform_13(%arg0: i32) -> (i32, i32) {
    %c0_i32 = arith.constant 0 : i32
    %c0_i32_0 = arith.constant 0 : i32
    %c0_i32_1 = arith.constant 0 : i32
    return %c0_i32, %c0_i32_0 : i32, i32
  }
  func.func @transform_14(%arg0: i32) -> (i32, i32) {
    %c0_i32 = arith.constant 0 : i32
    %c0_i32_0 = arith.constant 0 : i32
    %c0_i32_1 = arith.constant 0 : i32
    return %c0_i32, %c0_i32_0 : i32, i32
  }
  func.func @transform_15(%arg0: i32) -> (i32, i32) {
    %c0_i32 = arith.constant 0 : i32
    %c0_i32_0 = arith.constant 0 : i32
    %c0_i32_1 = arith.constant 0 : i32
    return %c0_i32, %c0_i32_0 : i32, i32
  }
  func.func @transform_16(%arg0: i32) -> (i32, i32) {
    %c0_i32 = arith.constant 0 : i32
    %c0_i32_0 = arith.constant 0 : i32
    %c0_i32_1 = arith.constant 0 : i32
    return %c0_i32, %c0_i32_0 : i32, i32
  }
  func.func @transform_17(%arg0: i32) -> (i32, i32) {
    %c0_i32 = arith.constant 0 : i32
    %c0_i32_0 = arith.constant 0 : i32
    %c0_i32_1 = arith.constant 0 : i32
    return %c0_i32, %c0_i32_0 : i32, i32
  }
  func.func @transform_18(%arg0: i32) -> (i32, i32, i32) {
    %c0_i32 = arith.constant 0 : i32
    %c0_i32_0 = arith.constant 0 : i32
    %c0_i32_1 = arith.constant 0 : i32
    return %arg0, %c0_i32, %c0_i32_0 : i32, i32, i32
  }
}

</mosaic_0001>

<llo_original>
// kernel: tpu_custom_call.1
$region0: #{tpu_custom_call.1}
  #allocation0 [shape = 'u32[]', space=smem, size = 0x4, offset = 0x4, fixed_abs, tag = 'smem constant byte address 0x4 - core index']
  #allocation1 [shape = 'u32[72,128]{1,0:T(1,128)}', space=vmem, size = 0x9000, scoped, tag = 'internal scratch']
  %s0 = inlined_call_operand.vmem [shape: f32[6,8,4], index: 0, kind: input, shape index: {}]
  %s1 = inlined_call_operand.hbm [shape: f32[1,8,32], index: 1, kind: input, shape index: {}]
  %s2 = inlined_call_operand.vmem [shape: bf16[32,32], index: 2, kind: input, shape index: {}]
  %s3 = inlined_call_operand.hbm [shape: f32[1,32], index: 3, kind: input, shape index: {}]
  %s4 = inlined_call_operand.hbm [shape: bf16[4,32], index: 4, kind: input, shape index: {}]
  %s5 = inlined_call_operand.hbm [shape: f32[1,32], index: 5, kind: input, shape index: {}]
  %s6 = inlined_call_operand.hbm [shape: bf16[4,32], index: 6, kind: input, shape index: {}]
  %s7 = inlined_call_operand.hbm [shape: f32[1,32], index: 7, kind: input, shape index: {}]
  %s8 = inlined_call_operand.vmem [shape: bf16[32,32], index: 8, kind: input, shape index: {}]
  %s9 = inlined_call_operand.hbm [shape: f32[1,32], index: 9, kind: input, shape index: {}]
  %s10 = inlined_call_operand.hbm [shape: bf16[4,32], index: 10, kind: input, shape index: {}]
  %s11 = inlined_call_operand.vmem [shape: f32[1,32], index: 11, kind: input, shape index: {}]
  %s12 = inlined_call_operand.vmem [shape: bf16[32,32], index: 12, kind: input, shape index: {}]
  %s13 = inlined_call_operand.vmem [shape: f32[1,32], index: 13, kind: input, shape index: {}]
  %s14 = inlined_call_operand.vmem [shape: bf16[32,32], index: 14, kind: input, shape index: {}]
  %s15 = inlined_call_operand.vmem [shape: f32[1,32], index: 15, kind: input, shape index: {}]
  %s16 = inlined_call_operand.vmem [shape: bf16[32,32], index: 16, kind: input, shape index: {}]
  %s17 = inlined_call_operand.vmem [shape: f32[1,32], index: 17, kind: input, shape index: {}]
  %s18 = inlined_call_operand.hbm [shape: f32[6,8,32], index: 18, kind: output, shape index: {}]
  %s19 = sld [smem:[#allocation0]]
  $region137: #{tpu_custom_call.1} parent=0
    _
  %s21 = ssub.s32 1, %s19
  %s22 = scalar_select 0, %s21, %s19
  $region1: #{tpu_custom_call.1} parent=0
    #allocation2 [shape = 'u8[4096]{0}', space=vmem, size = 0x1000, scoped, tag = 'input window, operand 1, single buffered']
    #allocation3 [shape = 's32[2]{0}', space=sflag, size = 0x8, scoped, tag = 'scoped memory for tpu_custom_call.1']
    #allocation4 [shape = 's32[2]{0}', space=sflag, size = 0x8, scoped, tag = 'scoped memory for tpu_custom_call.1']
    #allocation5 [shape = 'u8[512]{0}', space=vmem, size = 0x400, scoped, tag = 'input window, operand 3, single buffered']
    #allocation6 [shape = 's32[1]{0}', space=sflag, size = 0x4, scoped, tag = 'scoped memory for tpu_custom_call.1']
    #allocation7 [shape = 'u8[1024]{0}', space=vmem, size = 0x400, scoped, tag = 'input window, operand 4, single buffered']
    #allocation8 [shape = 'u8[512]{0}', space=vmem, size = 0x400, scoped, tag = 'input window, operand 5, single buffered']
    #allocation9 [shape = 's32[1]{0}', space=sflag, size = 0x4, scoped, tag = 'scoped memory for tpu_custom_call.1']
    #allocation10 [shape = 'u8[1024]{0}', space=vmem, size = 0x400, scoped, tag = 'input window, operand 6, single buffered']
    #allocation11 [shape = 'u8[512]{0}', space=vmem, size = 0x400, scoped, tag = 'input window, operand 7, single buffered']
    #allocation12 [shape = 's32[1]{0}', space=sflag, size = 0x4, scoped, tag = 'scoped memory for tpu_custom_call.1']
    #allocation13 [shape = 'u8[512]{0}', space=vmem, size = 0x400, scoped, tag = 'input window, operand 9, single buffered']
    #allocation14 [shape = 'u8[1024]{0}', space=vmem, size = 0x400, scoped, tag = 'input window, operand 10, single buffered']
    #allocation15 [shape = 's32[1]{0}', space=sflag, size = 0x4, scoped, tag = 'scoped memory for tpu_custom_call.1']
    #allocation16 [shape = 'u8[16384]{0}', space=vmem, size = 0x4000, scoped, tag = 'output window, operand 0']
    %23 = vsyncpa [#allocation3], 0
    %24 = vsyncpa [#allocation6], 0
    %25 = vsyncpa [#allocation9], 0
    %26 = vsyncpa [#allocation12], 0
    %27 = vsyncpa [#allocation15], 0
    %28 = vsyncpa [#allocation4], 0
    %s29 = scalar_lea.sflag [#allocation4], 1
    %30 = vsyncpa %s29, 0
    loop: start=0, step=1, limit=5
    $region2: #{tpu_custom_call.1} parent=1 // loop_pre_header
      _
    $region3: #{tpu_custom_call.1} parent=1 // loop_header
      %s32 = sphi 0, %s36
      %p33 = scmp.ge.s32.totalorder %s32, 5
      %s42 = sphi 0, %s44
      %s45 = sphi 0, %s42
      %s46 = sphi 0, %s45
      %s62 = sphi 0, %s46
      %s66 = sphi 0, %s66
      %s68 = sphi 0, %s66
      %s69 = sphi 0, %s68
      %s83 = sphi 0, %s69
      %s87 = sphi 0, %s87
      %s89 = sphi 0, %s87
      %s90 = sphi 0, %s89
      %s104 = sphi 0, %s90
      %s108 = sphi 0, %s108
      %s110 = sphi 0, %s108
      %s111 = sphi 0, %s110
      %s125 = sphi 0, %s111
      %s129 = sphi 0, %s129
      %s131 = sphi 0, %s129
      %s132 = sphi 0, %s131
      %s146 = sphi 0, %s132
      %s150 = sphi 0, %s150
      %s152 = sphi 0, %s150
      %s153 = sphi 0, %s152
      %s167 = sphi 0, %s153
      %s171 = sphi 0, %s171
      %s173 = sphi 0, %s171
      %s174 = sphi 0, %s173
      %s188 = sphi 0, %s174
      %s192 = sphi 0, %s192
      %s194 = sphi 0, %s192
      %s195 = sphi 0, %s194
      %s209 = sphi 0, %s195
      %s213 = sphi 0, %s213
      %s215 = sphi 0, %s213
      %s216 = sphi 0, %s215
      %s230 = sphi 0, %s216
      %s234 = sphi 0, %s234
      %s236 = sphi 0, %s234
      %s237 = sphi 0, %s236
      %s251 = sphi 0, %s237
      %s255 = sphi 0, %s255
      %s257 = sphi 0, %s255
      %s258 = sphi 0, %s257
      %s272 = sphi 0, %s258
      %s276 = sphi 0, %s276
      %s278 = sphi 0, %s276
      %s279 = sphi 0, %s278
      %s293 = sphi 0, %s279
      %s297 = sphi 0, %s297
      %s299 = sphi 0, %s297
      %s300 = sphi 0, %s299
      %s314 = sphi 0, %s300
      %s318 = sphi 0, %s318
      %s320 = sphi 0, %s318
      %s321 = sphi 0, %s320
      %s335 = sphi 0, %s321
      %s339 = sphi 0, %s339
      %s341 = sphi 0, %s339
      %s342 = sphi 0, %s341
      %s356 = sphi 0, %s342
      %s360 = sphi 0, %s360
      %s362 = sphi 0, %s360
      %s363 = sphi 0, %s362
      %s377 = sphi 0, %s363
      %s381 = sphi 0, %s381
      %s383 = sphi 0, %s381
      %s384 = sphi 0, %s383
      %s398 = sphi 0, %s384
      %s402 = sphi 0, %s402
      %s404 = sphi 0, %s402
      %s405 = sphi 0, %s404
      %s419 = sphi 0, %s405
      %s425 = sphi 0, %s427
      %s428 = sphi 0, %s425
      %s429 = sphi 0, %s428
      %s445 = sphi 0, %s429
    $region4: #{tpu_custom_call.1} parent=1 // loop_header_branch
      %35 = sbr.rel (%p33) target = $region8
    $region5: #{tpu_custom_call.1} parent=1 // loop_body
      %s37 = ssub.s32 %s32, 1
      %s38 = ssub.s32 %s32, 2
      %s39 = sadd.s32 %s32, 1
      %s40 = ssub.s32 %s32, %s39
      %p41 = scmp.eq.s32.totalorder %s40, 0
      %s43 = sadd.s32 %s42, 1
      %s44 = scalar_select %p41, %s42, %s43
      %p47 = pneg %p41
      %p48 = scmp.eq.s32.totalorder %s32, 2
      %p49 = por %p47, %p48
      %p50 = scmp.ne.s32.totalorder %s42, %s45
      %p51 = scmp.eq.s32.totalorder %s32, 0
      %p52 = por %p50, %p51
      %p53 = scmp.ne.s32.totalorder %s42, %s45
      %p54 = scmp.eq.s32.totalorder %s37, 2
      %p55 = por %p53, %p54
      %p56 = scmp.ne.s32.totalorder %s45, %s46
      %p57 = scmp.eq.s32.totalorder %s37, 0
      %p58 = por %p56, %p57
      %p59 = scmp.ne.s32.totalorder %s45, %s46
      %p60 = scmp.eq.s32.totalorder %s38, 2
      %p61 = por %p59, %p60
      %p63 = scmp.ne.s32.totalorder %s46, %s62
      %p64 = scmp.eq.s32.totalorder %s38, 0
      %p65 = por %p63, %p64
      %s67 = sadd.s32 %s66, 1
      %p70 = scmp.eq.s32.totalorder %s32, 2
      %p71 = scmp.ne.s32.totalorder %s66, %s68
      %p72 = scmp.eq.s32.totalorder %s32, 0
      %p73 = por %p71, %p72
      %p74 = scmp.ne.s32.totalorder %s66, %s68
      %p75 = scmp.eq.s32.totalorder %s37, 2
      %p76 = por %p74, %p75
      %p77 = scmp.ne.s32.totalorder %s68, %s69
      %p78 = scmp.eq.s32.totalorder %s37, 0
      %p79 = por %p77, %p78
      %p80 = scmp.ne.s32.totalorder %s68, %s69
      %p81 = scmp.eq.s32.totalorder %s38, 2
      %p82 = por %p80, %p81
      %p84 = scmp.ne.s32.totalorder %s69, %s83
      %p85 = scmp.eq.s32.totalorder %s38, 0
      %p86 = por %p84, %p85
      %s88 = sadd.s32 %s87, 1
      %p91 = scmp.eq.s32.totalorder %s32, 2
      %p92 = scmp.ne.s32.totalorder %s87, %s89
      %p93 = scmp.eq.s32.totalorder %s32, 0
      %p94 = por %p92, %p93
      %p95 = scmp.ne.s32.totalorder %s87, %s89
      %p96 = scmp.eq.s32.totalorder %s37, 2
      %p97 = por %p95, %p96
      %p98 = scmp.ne.s32.totalorder %s89, %s90
      %p99 = scmp.eq.s32.totalorder %s37, 0
      %p100 = por %p98, %p99
      %p101 = scmp.ne.s32.totalorder %s89, %s90
      %p102 = scmp.eq.s32.totalorder %s38, 2
      %p103 = por %p101, %p102
      %p105 = scmp.ne.s32.totalorder %s90, %s104
      %p106 = scmp.eq.s32.totalorder %s38, 0
      %p107 = por %p105, %p106
      %s109 = sadd.s32 %s108, 1
      %p112 = scmp.eq.s32.totalorder %s32, 2
      %p113 = scmp.ne.s32.totalorder %s108, %s110
      %p114 = scmp.eq.s32.totalorder %s32, 0
      %p115 = por %p113, %p114
      %p116 = scmp.ne.s32.totalorder %s108, %s110
      %p117 = scmp.eq.s32.totalorder %s37, 2
      %p118 = por %p116, %p117
      %p119 = scmp.ne.s32.totalorder %s110, %s111
      %p120 = scmp.eq.s32.totalorder %s37, 0
      %p121 = por %p119, %p120
      %p122 = scmp.ne.s32.totalorder %s110, %s111
      %p123 = scmp.eq.s32.totalorder %s38, 2
      %p124 = por %p122, %p123
      %p126 = scmp.ne.s32.totalorder %s111, %s125
      %p127 = scmp.eq.s32.totalorder %s38, 0
      %p128 = por %p126, %p127
      %s130 = sadd.s32 %s129, 1
      %p133 = scmp.eq.s32.totalorder %s32, 2
      %p134 = scmp.ne.s32.totalorder %s129, %s131
      %p135 = scmp.eq.s32.totalorder %s32, 0
      %p136 = por %p134, %p135
      %p137 = scmp.ne.s32.totalorder %s129, %s131
      %p138 = scmp.eq.s32.totalorder %s37, 2
      %p139 = por %p137, %p138
      %p140 = scmp.ne.s32.totalorder %s131, %s132
      %p141 = scmp.eq.s32.totalorder %s37, 0
      %p142 = por %p140, %p141
      %p143 = scmp.ne.s32.totalorder %s131, %s132
      %p144 = scmp.eq.s32.totalorder %s38, 2
      %p145 = por %p143, %p144
      %p147 = scmp.ne.s32.totalorder %s132, %s146
      %p148 = scmp.eq.s32.totalorder %s38, 0
      %p149 = por %p147, %p148
      %s151 = sadd.s32 %s150, 1
      %p154 = scmp.eq.s32.totalorder %s32, 2
      %p155 = scmp.ne.s32.totalorder %s150, %s152
      %p156 = scmp.eq.s32.totalorder %s32, 0
      %p157 = por %p155, %p156
      %p158 = scmp.ne.s32.totalorder %s150, %s152
      %p159 = scmp.eq.s32.totalorder %s37, 2
      %p160 = por %p158, %p159
      %p161 = scmp.ne.s32.totalorder %s152, %s153
      %p162 = scmp.eq.s32.totalorder %s37, 0
      %p163 = por %p161, %p162
      %p164 = scmp.ne.s32.totalorder %s152, %s153
      %p165 = scmp.eq.s32.totalorder %s38, 2
      %p166 = por %p164, %p165
      %p168 = scmp.ne.s32.totalorder %s153, %s167
      %p169 = scmp.eq.s32.totalorder %s38, 0
      %p170 = por %p168, %p169
      %s172 = sadd.s32 %s171, 1
      %p175 = scmp.eq.s32.totalorder %s32, 2
      %p176 = scmp.ne.s32.totalorder %s171, %s173
      %p177 = scmp.eq.s32.totalorder %s32, 0
      %p178 = por %p176, %p177
      %p179 = scmp.ne.s32.totalorder %s171, %s173
      %p180 = scmp.eq.s32.totalorder %s37, 2
      %p181 = por %p179, %p180
      %p182 = scmp.ne.s32.totalorder %s173, %s174
      %p183 = scmp.eq.s32.totalorder %s37, 0
      %p184 = por %p182, %p183
      %p185 = scmp.ne.s32.totalorder %s173, %s174
      %p186 = scmp.eq.s32.totalorder %s38, 2
      %p187 = por %p185, %p186
      %p189 = scmp.ne.s32.totalorder %s174, %s188
      %p190 = scmp.eq.s32.totalorder %s38, 0
      %p191 = por %p189, %p190
      %s193 = sadd.s32 %s192, 1
      %p196 = scmp.eq.s32.totalorder %s32, 2
      %p197 = scmp.ne.s32.totalorder %s192, %s194
      %p198 = scmp.eq.s32.totalorder %s32, 0
      %p199 = por %p197, %p198
      %p200 = scmp.ne.s32.totalorder %s192, %s194
      %p201 = scmp.eq.s32.totalorder %s37, 2
      %p202 = por %p200, %p201
      %p203 = scmp.ne.s32.totalorder %s194, %s195
      %p204 = scmp.eq.s32.totalorder %s37, 0
      %p205 = por %p203, %p204
      %p206 = scmp.ne.s32.totalorder %s194, %s195
      %p207 = scmp.eq.s32.totalorder %s38, 2
      %p208 = por %p206, %p207
      %p210 = scmp.ne.s32.totalorder %s195, %s209
      %p211 = scmp.eq.s32.totalorder %s38, 0
      %p212 = por %p210, %p211
      %s214 = sadd.s32 %s213, 1
      %p217 = scmp.eq.s32.totalorder %s32, 2
      %p218 = scmp.ne.s32.totalorder %s213, %s215
      %p219 = scmp.eq.s32.totalorder %s32, 0
      %p220 = por %p218, %p219
      %p221 = scmp.ne.s32.totalorder %s213, %s215
      %p222 = scmp.eq.s32.totalorder %s37, 2
      %p223 = por %p221, %p222
      %p224 = scmp.ne.s32.totalorder %s215, %s216
      %p225 = scmp.eq.s32.totalorder %s37, 0
      %p226 = por %p224, %p225
      %p227 = scmp.ne.s32.totalorder %s215, %s216
      %p228 = scmp.eq.s32.totalorder %s38, 2
      %p229 = por %p227, %p228
      %p231 = scmp.ne.s32.totalorder %s216, %s230
      %p232 = scmp.eq.s32.totalorder %s38, 0
      %p233 = por %p231, %p232
      %s235 = sadd.s32 %s234, 1
      %p238 = scmp.eq.s32.totalorder %s32, 2
      %p239 = scmp.ne.s32.totalorder %s234, %s236
      %p240 = scmp.eq.s32.totalorder %s32, 0
      %p241 = por %p239, %p240
      %p242 = scmp.ne.s32.totalorder %s234, %s236
      %p243 = scmp.eq.s32.totalorder %s37, 2
      %p244 = por %p242, %p243
      %p245 = scmp.ne.s32.totalorder %s236, %s237
      %p246 = scmp.eq.s32.totalorder %s37, 0
      %p247 = por %p245, %p246
      %p248 = scmp.ne.s32.totalorder %s236, %s237
      %p249 = scmp.eq.s32.totalorder %s38, 2
      %p250 = por %p248, %p249
      %p252 = scmp.ne.s32.totalorder %s237, %s251
      %p253 = scmp.eq.s32.totalorder %s38, 0
      %p254 = por %p252, %p253
      %s256 = sadd.s32 %s255, 1
      %p259 = scmp.eq.s32.totalorder %s32, 2
      %p260 = scmp.ne.s32.totalorder %s255, %s257
      %p261 = scmp.eq.s32.totalorder %s32, 0
      %p262 = por %p260, %p261
      %p263 = scmp.ne.s32.totalorder %s255, %s257
      %p264 = scmp.eq.s32.totalorder %s37, 2
      %p265 = por %p263, %p264
      %p266 = scmp.ne.s32.totalorder %s257, %s258
      %p267 = scmp.eq.s32.totalorder %s37, 0
      %p268 = por %p266, %p267
      %p269 = scmp.ne.s32.totalorder %s257, %s258
      %p270 = scmp.eq.s32.totalorder %s38, 2
      %p271 = por %p269, %p270
      %p273 = scmp.ne.s32.totalorder %s258, %s272
      %p274 = scmp.eq.s32.totalorder %s38, 0
      %p275 = por %p273, %p274
      %s277 = sadd.s32 %s276, 1
      %p280 = scmp.eq.s32.totalorder %s32, 2
      %p281 = scmp.ne.s32.totalorder %s276, %s278
      %p282 = scmp.eq.s32.totalorder %s32, 0
      %p283 = por %p281, %p282
      %p284 = scmp.ne.s32.totalorder %s276, %s278
      %p285 = scmp.eq.s32.totalorder %s37, 2
      %p286 = por %p284, %p285
      %p287 = scmp.ne.s32.totalorder %s278, %s279
      %p288 = scmp.eq.s32.totalorder %s37, 0
      %p289 = por %p287, %p288
      %p290 = scmp.ne.s32.totalorder %s278, %s279
      %p291 = scmp.eq.s32.totalorder %s38, 2
      %p292 = por %p290, %p291
      %p294 = scmp.ne.s32.totalorder %s279, %s293
      %p295 = scmp.eq.s32.totalorder %s38, 0
      %p296 = por %p294, %p295
      %s298 = sadd.s32 %s297, 1
      %p301 = scmp.eq.s32.totalorder %s32, 2
      %p302 = scmp.ne.s32.totalorder %s297, %s299
      %p303 = scmp.eq.s32.totalorder %s32, 0
      %p304 = por %p302, %p303
      %p305 = scmp.ne.s32.totalorder %s297, %s299
      %p306 = scmp.eq.s32.totalorder %s37, 2
      %p307 = por %p305, %p306
      %p308 = scmp.ne.s32.totalorder %s299, %s300
      %p309 = scmp.eq.s32.totalorder %s37, 0
      %p310 = por %p308, %p309
      %p311 = scmp.ne.s32.totalorder %s299, %s300
      %p312 = scmp.eq.s32.totalorder %s38, 2
      %p313 = por %p311, %p312
      %p315 = scmp.ne.s32.totalorder %s300, %s314
      %p316 = scmp.eq.s32.totalorder %s38, 0
      %p317 = por %p315, %p316
      %s319 = sadd.s32 %s318, 1
      %p322 = scmp.eq.s32.totalorder %s32, 2
      %p323 = scmp.ne.s32.totalorder %s318, %s320
      %p324 = scmp.eq.s32.totalorder %s32, 0
      %p325 = por %p323, %p324
      %p326 = scmp.ne.s32.totalorder %s318, %s320
      %p327 = scmp.eq.s32.totalorder %s37, 2
      %p328 = por %p326, %p327
      %p329 = scmp.ne.s32.totalorder %s320, %s321
      %p330 = scmp.eq.s32.totalorder %s37, 0
      %p331 = por %p329, %p330
      %p332 = scmp.ne.s32.totalorder %s320, %s321
      %p333 = scmp.eq.s32.totalorder %s38, 2
      %p334 = por %p332, %p333
      %p336 = scmp.ne.s32.totalorder %s321, %s335
      %p337 = scmp.eq.s32.totalorder %s38, 0
      %p338 = por %p336, %p337
      %s340 = sadd.s32 %s339, 1
      %p343 = scmp.eq.s32.totalorder %s32, 2
      %p344 = scmp.ne.s32.totalorder %s339, %s341
      %p345 = scmp.eq.s32.totalorder %s32, 0
      %p346 = por %p344, %p345
      %p347 = scmp.ne.s32.totalorder %s339, %s341
      %p348 = scmp.eq.s32.totalorder %s37, 2
      %p349 = por %p347, %p348
      %p350 = scmp.ne.s32.totalorder %s341, %s342
      %p351 = scmp.eq.s32.totalorder %s37, 0
      %p352 = por %p350, %p351
      %p353 = scmp.ne.s32.totalorder %s341, %s342
      %p354 = scmp.eq.s32.totalorder %s38, 2
      %p355 = por %p353, %p354
      %p357 = scmp.ne.s32.totalorder %s342, %s356
      %p358 = scmp.eq.s32.totalorder %s38, 0
      %p359 = por %p357, %p358
      %s361 = sadd.s32 %s360, 1
      %p364 = scmp.eq.s32.totalorder %s32, 2
      %p365 = scmp.ne.s32.totalorder %s360, %s362
      %p366 = scmp.eq.s32.totalorder %s32, 0
      %p367 = por %p365, %p366
      %p368 = scmp.ne.s32.totalorder %s360, %s362
      %p369 = scmp.eq.s32.totalorder %s37, 2
      %p370 = por %p368, %p369
      %p371 = scmp.ne.s32.totalorder %s362, %s363
      %p372 = scmp.eq.s32.totalorder %s37, 0
      %p373 = por %p371, %p372
      %p374 = scmp.ne.s32.totalorder %s362, %s363
      %p375 = scmp.eq.s32.totalorder %s38, 2
      %p376 = por %p374, %p375
      %p378 = scmp.ne.s32.totalorder %s363, %s377
      %p379 = scmp.eq.s32.totalorder %s38, 0
      %p380 = por %p378, %p379
      %s382 = sadd.s32 %s381, 1
      %p385 = scmp.eq.s32.totalorder %s32, 2
      %p386 = scmp.ne.s32.totalorder %s381, %s383
      %p387 = scmp.eq.s32.totalorder %s32, 0
      %p388 = por %p386, %p387
      %p389 = scmp.ne.s32.totalorder %s381, %s383
      %p390 = scmp.eq.s32.totalorder %s37, 2
      %p391 = por %p389, %p390
      %p392 = scmp.ne.s32.totalorder %s383, %s384
      %p393 = scmp.eq.s32.totalorder %s37, 0
      %p394 = por %p392, %p393
      %p395 = scmp.ne.s32.totalorder %s383, %s384
      %p396 = scmp.eq.s32.totalorder %s38, 2
      %p397 = por %p395, %p396
      %p399 = scmp.ne.s32.totalorder %s384, %s398
      %p400 = scmp.eq.s32.totalorder %s38, 0
      %p401 = por %p399, %p400
      %s403 = sadd.s32 %s402, 1
      %p406 = scmp.eq.s32.totalorder %s32, 2
      %p407 = scmp.ne.s32.totalorder %s402, %s404
      %p408 = scmp.eq.s32.totalorder %s32, 0
      %p409 = por %p407, %p408
      %p410 = scmp.ne.s32.totalorder %s402, %s404
      %p411 = scmp.eq.s32.totalorder %s37, 2
      %p412 = por %p410, %p411
      %p413 = scmp.ne.s32.totalorder %s404, %s405
      %p414 = scmp.eq.s32.totalorder %s37, 0
      %p415 = por %p413, %p414
      %p416 = scmp.ne.s32.totalorder %s404, %s405
      %p417 = scmp.eq.s32.totalorder %s38, 2
      %p418 = por %p416, %p417
      %p420 = scmp.ne.s32.totalorder %s405, %s419
      %p421 = scmp.eq.s32.totalorder %s38, 0
      %p422 = por %p420, %p421
      %s423 = ssub.s32 %s32, %s39
      %p424 = scmp.eq.s32.totalorder %s423, 0
      %s426 = sadd.s32 %s425, 1
      %s427 = scalar_select %p424, %s425, %s426
      %p430 = pneg %p424
      %p431 = scmp.eq.s32.totalorder %s32, 2
      %p432 = por %p430, %p431
      %p433 = scmp.ne.s32.totalorder %s425, %s428
      %p434 = scmp.eq.s32.totalorder %s32, 0
      %p435 = por %p433, %p434
      %p436 = scmp.ne.s32.totalorder %s425, %s428
      %p437 = scmp.eq.s32.totalorder %s37, 2
      %p438 = por %p436, %p437
      %p439 = scmp.ne.s32.totalorder %s428, %s429
      %p440 = scmp.eq.s32.totalorder %s37, 0
      %p441 = por %p439, %p440
      %p442 = scmp.ne.s32.totalorder %s428, %s429
      %p443 = scmp.eq.s32.totalorder %s38, 2
      %p444 = por %p442, %p443
      %p446 = scmp.ne.s32.totalorder %s429, %s445
      %p447 = scmp.eq.s32.totalorder %s38, 0
      %p448 = por %p446, %p447
      %p449 = scmp.le.s32.totalorder 1, %s32
      %p450 = scmp.lt.s32.totalorder %s32, 4
      %p451 = pnand %p449, %p450
      %p452 = pneg %p451
      // Predicated region
      $region9: #{tpu_custom_call.1} parent=5 // pred_check
        _
      $region10: #{tpu_custom_call.1} parent=5 // pred_check_branch
        %454 = sbr.rel (%p451) target = $region12
      $region11: #{tpu_custom_call.1} parent=5 // pred_region
        %s455 = ssub.s32 %s32, 1
        // Predicated region
        $region13: #{tpu_custom_call.1} parent=11 // pred_check
          %p456 = pneg %p79
        $region14: #{tpu_custom_call.1} parent=11 // pred_check_branch
          %458 = sbr.rel (%p456) target = $region16
        $region15: #{tpu_custom_call.1} parent=11 // pred_region
          %460 = vsyncadd [#allocation3], 0
          %s462 = sshll.u32 %s1, 4
          %s463 = int_to_ptr.hbm [resolvable:$true] %s462
          %s464 = sshll.u32 [#allocation2], 4
          %s465 = int_to_ptr.vmem [resolvable:$true] %s464
          %467 = dma.hbm_to_vmem [thread:$0]  %s463, 128, %s465, [#allocation3]
        $region16: #{tpu_custom_call.1} parent=11 // pred_fallthru
          _
        // Predicated region
        $region17: #{tpu_custom_call.1} parent=11 // pred_check
          %p468 = pneg %p100
        $region18: #{tpu_custom_call.1} parent=11 // pred_check_branch
          %470 = sbr.rel (%p468) target = $region20
        $region19: #{tpu_custom_call.1} parent=11 // pred_region
          _
        $region20: #{tpu_custom_call.1} parent=11 // pred_fallthru
          _
        // Predicated region
        $region21: #{tpu_custom_call.1} parent=11 // pred_check
          %p471 = pneg %p121
        $region22: #{tpu_custom_call.1} parent=11 // pred_check_branch
          %473 = sbr.rel (%p471) target = $region24
        $region23: #{tpu_custom_call.1} parent=11 // pred_region
          %475 = vsyncadd [#allocation6], 0
          %s477 = sshll.u32 %s3, 4
          %s478 = int_to_ptr.hbm [resolvable:$true] %s477
          %s479 = sshll.u32 [#allocation5], 4
          %s480 = int_to_ptr.vmem [resolvable:$true] %s479
          %482 = dma.hbm_to_vmem [thread:$0]  %s478, 16, %s480, [#allocation6]
        $region24: #{tpu_custom_call.1} parent=11 // pred_fallthru
          _
        // Predicated region
        $region25: #{tpu_custom_call.1} parent=11 // pred_check
          %p483 = pneg %p142
        $region26: #{tpu_custom_call.1} parent=11 // pred_check_branch
          %485 = sbr.rel (%p483) target = $region28
        $region27: #{tpu_custom_call.1} parent=11 // pred_region
          %487 = vsyncadd [#allocation6], 0
          %s489 = sshll.u32 %s4, 4
          %s490 = int_to_ptr.hbm [resolvable:$true] %s489
          %s491 = sshll.u32 [#allocation7], 4
          %s492 = int_to_ptr.vmem [resolvable:$true] %s491
          %494 = dma.hbm_to_vmem [thread:$0]  %s490, 32, %s492, [#allocation6]
        $region28: #{tpu_custom_call.1} parent=11 // pred_fallthru
          _
        // Predicated region
        $region29: #{tpu_custom_call.1} parent=11 // pred_check
          %p495 = pneg %p163
        $region30: #{tpu_custom_call.1} parent=11 // pred_check_branch
          %497 = sbr.rel (%p495) target = $region32
        $region31: #{tpu_custom_call.1} parent=11 // pred_region
          %499 = vsyncadd [#allocation9], 0
          %s501 = sshll.u32 %s5, 4
          %s502 = int_to_ptr.hbm [resolvable:$true] %s501
          %s503 = sshll.u32 [#allocation8], 4
          %s504 = int_to_ptr.vmem [resolvable:$true] %s503
          %506 = dma.hbm_to_vmem [thread:$0]  %s502, 16, %s504, [#allocation9]
        $region32: #{tpu_custom_call.1} parent=11 // pred_fallthru
          _
        // Predicated region
        $region33: #{tpu_custom_call.1} parent=11 // pred_check
          %p507 = pneg %p184
        $region34: #{tpu_custom_call.1} parent=11 // pred_check_branch
          %509 = sbr.rel (%p507) target = $region36
        $region35: #{tpu_custom_call.1} parent=11 // pred_region
          %511 = vsyncadd [#allocation9], 0
          %s513 = sshll.u32 %s6, 4
          %s514 = int_to_ptr.hbm [resolvable:$true] %s513
          %s515 = sshll.u32 [#allocation10], 4
          %s516 = int_to_ptr.vmem [resolvable:$true] %s515
          %518 = dma.hbm_to_vmem [thread:$0]  %s514, 32, %s516, [#allocation9]
        $region36: #{tpu_custom_call.1} parent=11 // pred_fallthru
          _
        // Predicated region
        $region37: #{tpu_custom_call.1} parent=11 // pred_check
          %p519 = pneg %p205
        $region38: #{tpu_custom_call.1} parent=11 // pred_check_branch
          %521 = sbr.rel (%p519) target = $region40
        $region39: #{tpu_custom_call.1} parent=11 // pred_region
          %523 = vsyncadd [#allocation12], 0
          %s525 = sshll.u32 %s7, 4
          %s526 = int_to_ptr.hbm [resolvable:$true] %s525
          %s527 = sshll.u32 [#allocation11], 4
          %s528 = int_to_ptr.vmem [resolvable:$true] %s527
          %530 = dma.hbm_to_vmem [thread:$0]  %s526, 16, %s528, [#allocation12]
        $region40: #{tpu_custom_call.1} parent=11 // pred_fallthru
          _
        // Predicated region
        $region41: #{tpu_custom_call.1} parent=11 // pred_check
          %p531 = pneg %p226
        $region42: #{tpu_custom_call.1} parent=11 // pred_check_branch
          %533 = sbr.rel (%p531) target = $region44
        $region43: #{tpu_custom_call.1} parent=11 // pred_region
          _
        $region44: #{tpu_custom_call.1} parent=11 // pred_fallthru
          _
        // Predicated region
        $region45: #{tpu_custom_call.1} parent=11 // pred_check
          %p534 = pneg %p247
        $region46: #{tpu_custom_call.1} parent=11 // pred_check_branch
          %536 = sbr.rel (%p534) target = $region48
        $region47: #{tpu_custom_call.1} parent=11 // pred_region
          %538 = vsyncadd [#allocation12], 0
          %s540 = sshll.u32 %s9, 4
          %s541 = int_to_ptr.hbm [resolvable:$true] %s540
          %s542 = sshll.u32 [#allocation13], 4
          %s543 = int_to_ptr.vmem [resolvable:$true] %s542
          %545 = dma.hbm_to_vmem [thread:$0]  %s541, 16, %s543, [#allocation12]
        $region48: #{tpu_custom_call.1} parent=11 // pred_fallthru
          _
        // Predicated region
        $region49: #{tpu_custom_call.1} parent=11 // pred_check
          %p546 = pneg %p268
        $region50: #{tpu_custom_call.1} parent=11 // pred_check_branch
          %548 = sbr.rel (%p546) target = $region52
        $region51: #{tpu_custom_call.1} parent=11 // pred_region
          %550 = vsyncadd [#allocation15], 0
          %s552 = sshll.u32 %s10, 4
          %s553 = int_to_ptr.hbm [resolvable:$true] %s552
          %s554 = sshll.u32 [#allocation14], 4
          %s555 = int_to_ptr.vmem [resolvable:$true] %s554
          %557 = dma.hbm_to_vmem [thread:$0]  %s553, 32, %s555, [#allocation15]
        $region52: #{tpu_custom_call.1} parent=11 // pred_fallthru
          _
        // Predicated region
        $region53: #{tpu_custom_call.1} parent=11 // pred_check
          %p558 = pneg %p289
        $region54: #{tpu_custom_call.1} parent=11 // pred_check_branch
          %560 = sbr.rel (%p558) target = $region56
        $region55: #{tpu_custom_call.1} parent=11 // pred_region
          _
        $region56: #{tpu_custom_call.1} parent=11 // pred_fallthru
          _
        // Predicated region
        $region57: #{tpu_custom_call.1} parent=11 // pred_check
          %p561 = pneg %p310
        $region58: #{tpu_custom_call.1} parent=11 // pred_check_branch
          %563 = sbr.rel (%p561) target = $region60
        $region59: #{tpu_custom_call.1} parent=11 // pred_region
          _
        $region60: #{tpu_custom_call.1} parent=11 // pred_fallthru
          _
        // Predicated region
        $region61: #{tpu_custom_call.1} parent=11 // pred_check
          %p564 = pneg %p331
        $region62: #{tpu_custom_call.1} parent=11 // pred_check_branch
          %566 = sbr.rel (%p564) target = $region64
        $region63: #{tpu_custom_call.1} parent=11 // pred_region
          _
        $region64: #{tpu_custom_call.1} parent=11 // pred_fallthru
          _
        // Predicated region
        $region65: #{tpu_custom_call.1} parent=11 // pred_check
          %p567 = pneg %p352
        $region66: #{tpu_custom_call.1} parent=11 // pred_check_branch
          %569 = sbr.rel (%p567) target = $region68
        $region67: #{tpu_custom_call.1} parent=11 // pred_region
          _
        $region68: #{tpu_custom_call.1} parent=11 // pred_fallthru
          _
        // Predicated region
        $region69: #{tpu_custom_call.1} parent=11 // pred_check
          %p570 = pneg %p373
        $region70: #{tpu_custom_call.1} parent=11 // pred_check_branch
          %572 = sbr.rel (%p570) target = $region72
        $region71: #{tpu_custom_call.1} parent=11 // pred_region
          _
        $region72: #{tpu_custom_call.1} parent=11 // pred_fallthru
          _
        // Predicated region
        $region73: #{tpu_custom_call.1} parent=11 // pred_check
          %p573 = pneg %p394
        $region74: #{tpu_custom_call.1} parent=11 // pred_check_branch
          %575 = sbr.rel (%p573) target = $region76
        $region75: #{tpu_custom_call.1} parent=11 // pred_region
          _
        $region76: #{tpu_custom_call.1} parent=11 // pred_fallthru
          _
        // Predicated region
        $region77: #{tpu_custom_call.1} parent=11 // pred_check
          %p576 = pneg %p415
        $region78: #{tpu_custom_call.1} parent=11 // pred_check_branch
          %578 = sbr.rel (%p576) target = $region80
        $region79: #{tpu_custom_call.1} parent=11 // pred_region
          _
        $region80: #{tpu_custom_call.1} parent=11 // pred_fallthru
          _
      $region12: #{tpu_custom_call.1} parent=5 // pred_fallthru
        _
      %p579 = scmp.lt.s32.totalorder %s32, 3
      // Predicated region
      $region81: #{tpu_custom_call.1} parent=5 // pred_check
        %p580 = pneg %p579
      $region82: #{tpu_custom_call.1} parent=5 // pred_check_branch
        %582 = sbr.rel (%p580) target = $region84
      $region83: #{tpu_custom_call.1} parent=5 // pred_region
        // Predicated region
        $region85: #{tpu_custom_call.1} parent=83 // pred_check
          %p583 = pneg %p52
        $region86: #{tpu_custom_call.1} parent=83 // pred_check_branch
          %585 = sbr.rel (%p583) target = $region88
        $region87: #{tpu_custom_call.1} parent=83 // pred_region
          %s586 = smul.u32 2, %s32
          %p587 = scmp.lt.s32.totalorder %s586, 5
          %s588 = scalar_select %p587, %s586, 5
          %s589 = smul.addr %s588, 8
          %s590 = scalar_lea.vmem %s0, %s589
          %s591 = smul.u32 2, %s32
        $region88: #{tpu_custom_call.1} parent=83 // pred_fallthru
          _
      $region84: #{tpu_custom_call.1} parent=5 // pred_fallthru
        _
      %p592 = scmp.le.s32.totalorder 1, %s32
      %p593 = scmp.lt.s32.totalorder %s32, 4
      %p594 = pnand %p592, %p593
      %p595 = pneg %p594
      // Predicated region
      $region89: #{tpu_custom_call.1} parent=5 // pred_check
        _
      $region90: #{tpu_custom_call.1} parent=5 // pred_check_branch
        %597 = sbr.rel (%p594) target = $region92
      $region91: #{tpu_custom_call.1} parent=5 // pred_region
        %s598 = ssub.s32 %s32, 1
        // Predicated region
        $region93: #{tpu_custom_call.1} parent=91 // pred_check
          %p599 = pneg %p79
        $region94: #{tpu_custom_call.1} parent=91 // pred_check_branch
          %601 = sbr.rel (%p599) target = $region96
        $region95: #{tpu_custom_call.1} parent=91 // pred_region
          %603 = dma.done [#allocation3], 128
        $region96: #{tpu_custom_call.1} parent=91 // pred_fallthru
          _
        // Predicated region
        $region97: #{tpu_custom_call.1} parent=91 // pred_check
          %p604 = pneg %p121
        $region98: #{tpu_custom_call.1} parent=91 // pred_check_branch
          %606 = sbr.rel (%p604) target = $region100
        $region99: #{tpu_custom_call.1} parent=91 // pred_region
          %608 = dma.done [#allocation6], 16
        $region100: #{tpu_custom_call.1} parent=91 // pred_fallthru
          _
        // Predicated region
        $region101: #{tpu_custom_call.1} parent=91 // pred_check
          %p609 = pneg %p142
        $region102: #{tpu_custom_call.1} parent=91 // pred_check_branch
          %611 = sbr.rel (%p609) target = $region104
        $region103: #{tpu_custom_call.1} parent=91 // pred_region
          %613 = dma.done [#allocation6], 32
        $region104: #{tpu_custom_call.1} parent=91 // pred_fallthru
          _
        // Predicated region
        $region105: #{tpu_custom_call.1} parent=91 // pred_check
          %p614 = pneg %p163
        $region106: #{tpu_custom_call.1} parent=91 // pred_check_branch
          %616 = sbr.rel (%p614) target = $region108
        $region107: #{tpu_custom_call.1} parent=91 // pred_region
          %618 = dma.done [#allocation9], 16
        $region108: #{tpu_custom_call.1} parent=91 // pred_fallthru
          _
        // Predicated region
        $region109: #{tpu_custom_call.1} parent=91 // pred_check
          %p619 = pneg %p184
        $region110: #{tpu_custom_call.1} parent=91 // pred_check_branch
          %621 = sbr.rel (%p619) target = $region112
        $region111: #{tpu_custom_call.1} parent=91 // pred_region
          %623 = dma.done [#allocation9], 32
        $region112: #{tpu_custom_call.1} parent=91 // pred_fallthru
          _
        // Predicated region
        $region113: #{tpu_custom_call.1} parent=91 // pred_check
          %p624 = pneg %p205
        $region114: #{tpu_custom_call.1} parent=91 // pred_check_branch
          %626 = sbr.rel (%p624) target = $region116
        $region115: #{tpu_custom_call.1} parent=91 // pred_region
          %628 = dma.done [#allocation12], 16
        $region116: #{tpu_custom_call.1} parent=91 // pred_fallthru
          _
        // Predicated region
        $region117: #{tpu_custom_call.1} parent=91 // pred_check
          %p629 = pneg %p247
        $region118: #{tpu_custom_call.1} parent=91 // pred_check_branch
          %631 = sbr.rel (%p629) target = $region120
        $region119: #{tpu_custom_call.1} parent=91 // pred_region
          %633 = dma.done [#allocation12], 16
        $region120: #{tpu_custom_call.1} parent=91 // pred_fallthru
          _
        // Predicated region
        $region121: #{tpu_custom_call.1} parent=91 // pred_check
          %p634 = pneg %p268
        $region122: #{tpu_custom_call.1} parent=91 // pred_check_branch
          %636 = sbr.rel (%p634) target = $region124
        $region123: #{tpu_custom_call.1} parent=91 // pred_region
          %638 = dma.done [#allocation15], 32
        $region124: #{tpu_custom_call.1} parent=91 // pred_fallthru
          _
        %s639 = smul.u32 2, %s37
        %p640 = scmp.lt.s32.totalorder %s639, 5
        %s641 = scalar_select %p640, %s639, 5
        %s642 = smul.addr %s641, 8
        %s643 = scalar_lea.vmem %s0, %s642
        %p644 = pneg %p58
        %p645 = pneg %p55
        %p646 = pneg %p79
        %p647 = pneg %p76
        %p648 = pneg %p100
        %p649 = pneg %p97
        %p650 = pneg %p121
        %p651 = pneg %p118
        %p652 = pneg %p142
        %p653 = pneg %p139
        %p654 = pneg %p163
        %p655 = pneg %p160
        %p656 = pneg %p184
        %p657 = pneg %p181
        %p658 = pneg %p205
        %p659 = pneg %p202
        %p660 = pneg %p226
        %p661 = pneg %p223
        %p662 = pneg %p247
        %p663 = pneg %p244
        %p664 = pneg %p268
        %p665 = pneg %p265
        %p666 = pneg %p289
        %p667 = pneg %p286
        %p668 = pneg %p310
        %p669 = pneg %p307
        %p670 = pneg %p331
        %p671 = pneg %p328
        %p672 = pneg %p352
        %p673 = pneg %p349
        %p674 = pneg %p373
        %p675 = pneg %p370
        %p676 = pneg %p394
        %p677 = pneg %p391
        %p678 = pneg %p415
        %p679 = pneg %p412
        %p680 = pneg %p441
        %p681 = pneg %p438
        %s682 = sand.u32 %s428, 1
        %s683 = scalar_lea.sflag [#allocation4], %s682
        %s684 = sand.u32 %s428, 1
        %s685 = smul.addr %s684, 16
        %s686 = scalar_lea.vmem [#allocation16], %s685
        %s687 = smul.u32 2, %s37
        %p688 = scmp.lt.s32.totalorder %s687, 5
        %s689 = scalar_select %p688, %s687, 5
        %s690 = smul.addr %s689, 8
        %s691 = scalar_lea.vmem %s0, %s690
        %s692 = smul.u32 2, %s37
        %s693 = smul.u32 2, %s37
        %v695 = vld [vmem:[%s691] sm:$0xff]
        %v696 = vld [vmem:[%s691 + $0x8] sm:$0xff]
        %v697 = vld [vmem:[#allocation2] sm:$0xff]
        %v698 = vld [vmem:[%s2] sm:$0xf]
        %v699 = vld [vmem:[%s2 + $0x4] sm:$0xf]
        %v700 = vld [vmem:[%s2 + $0x8] sm:$0xf]
        %v701 = vld [vmem:[%s2 + $0xc] sm:$0xf]
        %v702 = vld [vmem:[#allocation5] sm:$0x1]
        %v703 = vld [vmem:[#allocation7] sm:$0x3]
        %v704 = vld [vmem:[#allocation8] sm:$0x1]
        %v705 = vld [vmem:[#allocation10] sm:$0x3]
        %v706 = vld [vmem:[#allocation11] sm:$0x1]
        %v707 = vld [vmem:[%s8] sm:$0xf]
        %v708 = vld [vmem:[%s8 + $0x4] sm:$0xf]
        %v709 = vld [vmem:[%s8 + $0x8] sm:$0xf]
        %v710 = vld [vmem:[%s8 + $0xc] sm:$0xf]
        %v711 = vld [vmem:[#allocation13] sm:$0x1]
        %v712 = vpack.c.bf16 %v697, %v697
        %v713 = vpack.c.bf16 %v696, %v695
        %v715 = vperm.slane %v702, 0
        %v721 = vunpack.c.l.b16 %v698
        %v722 = vunpack.c.l.b16 %v699
        %v723 = vunpack.c.l.b16 %v700
        %v724 = vunpack.c.l.b16 %v701
        %v725 = vpack.c.b16 %v722, %v721
        %v726 = vpack.c.b16 %v724, %v723
        %vm729 = vcmask 261120
        %v731 = vsel %vm729, %v712, 0
        %733 = vmatpush.bf16.msra.mxu0 0
        %734 = vmatpush.bf16.msra.mxu0 0
        %735 = vmatpush.bf16.msra.mxu0 0
        %736 = vmatpush.bf16.msra.mxu0 0
        %737 = vmatpush.bf16.msra.mxu0 0
        %738 = vmatpush.bf16.msra.mxu0 0
        %739 = vmatpush.bf16.msra.mxu0 %v726
        %740 = vmatpush.bf16.msra.mxu0 %v725
        %741 = vmatmul.bf16.gmra.mxu0 %v731
        %v742 = vpop.f32.mrf.mxu0
        %v743 = vadd.f32 %v715, %v742
        %v744 = vpop.f32.mrf.mxu0
        %745 = vdwg.mxu0
        %v747 = vperm.slane %v704, 0
        %vm749 = vcmask 31744
        %v751 = vsel %vm749, %v713, 0
        %vm753 = vcmask 1041408
        %v755 = vsel %vm753, %v703, 0
        %757 = vmatpush.bf16.msra.mxu0 0
        %758 = vmatpush.bf16.msra.mxu0 0
        %759 = vmatpush.bf16.msra.mxu0 0
        %760 = vmatpush.bf16.msra.mxu0 0
        %761 = vmatpush.bf16.msra.mxu0 0
        %762 = vmatpush.bf16.msra.mxu0 0
        %763 = vmatpush.bf16.msra.mxu0 0
        %764 = vmatpush.bf16.msra.mxu0 %v755
        %765 = vmatmul.bf16.gmra.mxu0 %v751
        %v766 = vpop.f32.mrf.mxu0
        %v767 = vadd.f32 %v747, %v766
        %v768 = vpop.f32.mrf.mxu0
        %v769 = vadd.f32 %v747, %v768
        %770 = vdwg.mxu0
        %v771 = vmul.f32 %v767, 0.17677669
        %v772 = vmul.f32 %v769, 0.17677669
        %v774 = vperm.slane %v706, 0
        %v777 = vsel %vm753, %v705, 0
        %779 = vmatpush.bf16.msra.mxu0 0
        %780 = vmatpush.bf16.msra.mxu0 0
        %781 = vmatpush.bf16.msra.mxu0 0
        %782 = vmatpush.bf16.msra.mxu0 0
        %783 = vmatpush.bf16.msra.mxu0 0
        %784 = vmatpush.bf16.msra.mxu0 0
        %785 = vmatpush.bf16.msra.mxu0 0
        %786 = vmatpush.bf16.msra.mxu0 %v777
        %787 = vmatmul.bf16.gmra.mxu0 %v751
        %v788 = vpop.f32.mrf.mxu0
        %v789 = vadd.f32 %v774, %v788
        %v790 = vpop.f32.mrf.mxu0
        %v791 = vadd.f32 %v774, %v790
        %792 = vdwg.mxu0
        %v793 = vlaneseq
        %v794 = vand.u32 %v793, 127
        %vm795 = vcmp.ge.s32.totalorder %v794, 0
        %vm796 = vcmp.lt.s32.totalorder %v794, 8
        %vm797 = vmand %vm795, %vm796
        %vm798 = vcmp.ge.s32.totalorder %v794, 8
        %vm799 = vcmp.lt.s32.totalorder %v794, 16
        %vm800 = vmand %vm798, %vm799
        %vm801 = vcmp.ge.s32.totalorder %v794, 16
        %vm802 = vcmp.lt.s32.totalorder %v794, 24
        %vm803 = vmand %vm801, %vm802
        %vm804 = vcmp.ge.s32.totalorder %v794, 24
        %vm805 = vcmp.lt.s32.totalorder %v794, 32
        %vm806 = vmand %vm804, %vm805
        %v807 = vsel %vm797, 1, 0
        %vm808 = vcmp.eq.s32.totalorder %v807, 1
        %v809 = vsel %vm808, %v743, 0.0
        %v810 = vpack.c.bf16 %v809, %v809
        %v811 = vsel %vm800, 1, 0
        %vm812 = vcmp.eq.s32.totalorder %v811, 1
        %v813 = vsel %vm812, %v743, 0.0
        %v814 = vpack.c.bf16 %v813, %v813
        %v815 = vsel %vm803, 1, 0
        %vm816 = vcmp.eq.s32.totalorder %v815, 1
        %v817 = vsel %vm816, %v743, 0.0
        %v818 = vpack.c.bf16 %v817, %v817
        %v819 = vsel %vm806, 1, 0
        %vm820 = vcmp.eq.s32.totalorder %v819, 1
        %v821 = vsel %vm820, %v743, 0.0
        %v822 = vpack.c.bf16 %v821, %v821
        %v823 = vpack.c.bf16 %v771, %v771
        %v824 = vpack.c.bf16 %v789, %v789
        %v826 = vsel %vm729, %v810, 0
        %v829 = vsel %vm729, %v823, 0
        %831 = vmatpush.bf16.xpose.msra.mxu0 0
        %832 = vmatpush.bf16.xpose.msra.mxu0 0
        %833 = vmatpush.bf16.xpose.msra.mxu0 0
        %834 = vmatpush.bf16.xpose.msra.mxu0 0
        %835 = vmatpush.bf16.xpose.msra.mxu0 0
        %836 = vmatpush.bf16.xpose.msra.mxu0 0
        %837 = vmatpush.bf16.xpose.msra.mxu0 0
        %838 = vmatpush.bf16.xpose.msra.mxu0 %v829
        %839 = vmatmul.bf16.gmra.mxu0 %v826
        %v840 = vpop.f32.mrf.mxu0
        %v841 = vadd.f32 0.0, %v840
        %v842 = vpop.f32.mrf.mxu0
        %843 = vdwg.mxu0
        %vm844 = vcmask 64512
        %v845 = vsel %vm844, %v841, -inf
        %846 = vmax.xlane.f32.xlu0 %v845
        %v847 = vpop.xlane.xlu0 %846
        %v848 = vsub.f32 %v841, %v847
        %v849 = vmul.f32 %v848, 1.442695
        %v850 = vpow.pop %v849
        %v851 = vsel %vm844, %v850, 0.0
        %852 = vadd.xlane.f32.xlu0 %v851
        %v853 = vpop.xlane.xlu0 %852
        %v854 = vrcp.pop %v853
        %v855 = vmul.f32 %v850, %v854
        %v856 = vpack.c.bf16 %v855, %v855
        %v858 = vsel %vm844, %v856, 0
        %vm860 = vcmask 1043456
        %v862 = vsel %vm860, %v824, 0
        %864 = vmatpush.bf16.msra.mxu0 0
        %865 = vmatpush.bf16.msra.mxu0 0
        %866 = vmatpush.bf16.msra.mxu0 0
        %867 = vmatpush.bf16.msra.mxu0 0
        %868 = vmatpush.bf16.msra.mxu0 0
        %869 = vmatpush.bf16.msra.mxu0 0
        %870 = vmatpush.bf16.msra.mxu0 0
        %871 = vmatpush.bf16.msra.mxu0 %v862
        %872 = vmatmul.bf16.gmra.mxu0 %v858
        %v873 = vpop.f32.mrf.mxu0
        %v874 = vadd.f32 0.0, %v873
        %v875 = vpop.f32.mrf.mxu0
        %876 = vdwg.mxu0
        %v877 = vsel %vm808, %v874, 0.0
        %v878 = vadd.f32 %v877, 0.0
        %v880 = vsel %vm729, %v814, 0
        %882 = vmatpush.bf16.xpose.msra.mxu0 0
        %883 = vmatpush.bf16.xpose.msra.mxu0 0
        %884 = vmatpush.bf16.xpose.msra.mxu0 0
        %885 = vmatpush.bf16.xpose.msra.mxu0 0
        %886 = vmatpush.bf16.xpose.msra.mxu0 0
        %887 = vmatpush.bf16.xpose.msra.mxu0 0
        %888 = vmatpush.bf16.xpose.msra.mxu0 0
        %889 = vmatpush.bf16.xpose.msra.mxu0 %v829
        %890 = vmatmul.bf16.gmra.mxu0 %v880
        %v891 = vpop.f32.mrf.mxu0
        %v892 = vadd.f32 0.0, %v891
        %v893 = vpop.f32.mrf.mxu0
        %894 = vdwg.mxu0
        %v895 = vsel %vm844, %v892, -inf
        %896 = vmax.xlane.f32.xlu0 %v895
        %v897 = vpop.xlane.xlu0 %896
        %v898 = vsub.f32 %v892, %v897
        %v899 = vmul.f32 %v898, 1.442695
        %v900 = vpow.pop %v899
        %v901 = vsel %vm844, %v900, 0.0
        %902 = vadd.xlane.f32.xlu0 %v901
        %v903 = vpop.xlane.xlu0 %902
        %v904 = vrcp.pop %v903
        %v905 = vmul.f32 %v900, %v904
        %v906 = vpack.c.bf16 %v905, %v905
        %v908 = vsel %vm844, %v906, 0
        %910 = vmatpush.bf16.msra.mxu0 0
        %911 = vmatpush.bf16.msra.mxu0 0
        %912 = vmatpush.bf16.msra.mxu0 0
        %913 = vmatpush.bf16.msra.mxu0 0
        %914 = vmatpush.bf16.msra.mxu0 0
        %915 = vmatpush.bf16.msra.mxu0 0
        %916 = vmatpush.bf16.msra.mxu0 0
        %917 = vmatpush.bf16.msra.mxu0 %v862
        %918 = vmatmul.bf16.gmra.mxu0 %v908
        %v919 = vpop.f32.mrf.mxu0
        %v920 = vadd.f32 0.0, %v919
        %v921 = vpop.f32.mrf.mxu0
        %922 = vdwg.mxu0
        %v923 = vsel %vm812, %v920, 0.0
        %v924 = vadd.f32 %v878, %v923
        %v926 = vsel %vm729, %v818, 0
        %928 = vmatpush.bf16.xpose.msra.mxu0 0
        %929 = vmatpush.bf16.xpose.msra.mxu0 0
        %930 = vmatpush.bf16.xpose.msra.mxu0 0
        %931 = vmatpush.bf16.xpose.msra.mxu0 0
        %932 = vmatpush.bf16.xpose.msra.mxu0 0
        %933 = vmatpush.bf16.xpose.msra.mxu0 0
        %934 = vmatpush.bf16.xpose.msra.mxu0 0
        %935 = vmatpush.bf16.xpose.msra.mxu0 %v829
        %936 = vmatmul.bf16.gmra.mxu0 %v926
        %v937 = vpop.f32.mrf.mxu0
        %v938 = vadd.f32 0.0, %v937
        %v939 = vpop.f32.mrf.mxu0
        %940 = vdwg.mxu0
        %v941 = vsel %vm844, %v938, -inf
        %942 = vmax.xlane.f32.xlu0 %v941
        %v943 = vpop.xlane.xlu0 %942
        %v944 = vsub.f32 %v938, %v943
        %v945 = vmul.f32 %v944, 1.442695
        %v946 = vpow.pop %v945
        %v947 = vsel %vm844, %v946, 0.0
        %948 = vadd.xlane.f32.xlu0 %v947
        %v949 = vpop.xlane.xlu0 %948
        %v950 = vrcp.pop %v949
        %v951 = vmul.f32 %v946, %v950
        %v952 = vpack.c.bf16 %v951, %v951
        %v954 = vsel %vm844, %v952, 0
        %956 = vmatpush.bf16.msra.mxu0 0
        %957 = vmatpush.bf16.msra.mxu0 0
        %958 = vmatpush.bf16.msra.mxu0 0
        %959 = vmatpush.bf16.msra.mxu0 0
        %960 = vmatpush.bf16.msra.mxu0 0
        %961 = vmatpush.bf16.msra.mxu0 0
        %962 = vmatpush.bf16.msra.mxu0 0
        %963 = vmatpush.bf16.msra.mxu0 %v862
        %964 = vmatmul.bf16.gmra.mxu0 %v954
        %v965 = vpop.f32.mrf.mxu0
        %v966 = vadd.f32 0.0, %v965
        %v967 = vpop.f32.mrf.mxu0
        %968 = vdwg.mxu0
        %v969 = vsel %vm816, %v966, 0.0
        %v970 = vadd.f32 %v924, %v969
        %v972 = vsel %vm729, %v822, 0
        %974 = vmatpush.bf16.xpose.msra.mxu0 0
        %975 = vmatpush.bf16.xpose.msra.mxu0 0
        %976 = vmatpush.bf16.xpose.msra.mxu0 0
        %977 = vmatpush.bf16.xpose.msra.mxu0 0
        %978 = vmatpush.bf16.xpose.msra.mxu0 0
        %979 = vmatpush.bf16.xpose.msra.mxu0 0
        %980 = vmatpush.bf16.xpose.msra.mxu0 0
        %981 = vmatpush.bf16.xpose.msra.mxu0 %v829
        %982 = vmatmul.bf16.gmra.mxu0 %v972
        %v983 = vpop.f32.mrf.mxu0
        %v984 = vadd.f32 0.0, %v983
        %v985 = vpop.f32.mrf.mxu0
        %986 = vdwg.mxu0
        %v987 = vsel %vm844, %v984, -inf
        %988 = vmax.xlane.f32.xlu0 %v987
        %v989 = vpop.xlane.xlu0 %988
        %v990 = vsub.f32 %v984, %v989
        %v991 = vmul.f32 %v990, 1.442695
        %v992 = vpow.pop %v991
        %v993 = vsel %vm844, %v992, 0.0
        %994 = vadd.xlane.f32.xlu0 %v993
        %v995 = vpop.xlane.xlu0 %994
        %v996 = vrcp.pop %v995
        %v997 = vmul.f32 %v992, %v996
        %v998 = vpack.c.bf16 %v997, %v997
        %v1000 = vsel %vm844, %v998, 0
        %1002 = vmatpush.bf16.msra.mxu0 0
        %1003 = vmatpush.bf16.msra.mxu0 0
        %1004 = vmatpush.bf16.msra.mxu0 0
        %1005 = vmatpush.bf16.msra.mxu0 0
        %1006 = vmatpush.bf16.msra.mxu0 0
        %1007 = vmatpush.bf16.msra.mxu0 0
        %1008 = vmatpush.bf16.msra.mxu0 0
        %1009 = vmatpush.bf16.msra.mxu0 %v862
        %1010 = vmatmul.bf16.gmra.mxu0 %v1000
        %v1011 = vpop.f32.mrf.mxu0
        %v1012 = vadd.f32 0.0, %v1011
        %v1013 = vpop.f32.mrf.mxu0
        %1014 = vdwg.mxu0
        %v1015 = vsel %vm820, %v1012, 0.0
        %v1016 = vadd.f32 %v970, %v1015
        %v1017 = vadd.f32 %v743, %v1016
        %v1018 = vpack.c.bf16 %v772, %v772
        %v1019 = vpack.c.bf16 %v791, %v791
        %v1021 = vsel %vm729, %v1018, 0
        %1023 = vmatpush.bf16.xpose.msra.mxu0 0
        %1024 = vmatpush.bf16.xpose.msra.mxu0 0
        %1025 = vmatpush.bf16.xpose.msra.mxu0 0
        %1026 = vmatpush.bf16.xpose.msra.mxu0 0
        %1027 = vmatpush.bf16.xpose.msra.mxu0 0
        %1028 = vmatpush.bf16.xpose.msra.mxu0 0
        %1029 = vmatpush.bf16.xpose.msra.mxu0 0
        %1030 = vmatpush.bf16.xpose.msra.mxu0 %v1021
        %1031 = vmatmul.bf16.gmra.mxu0 %v826
        %v1032 = vpop.f32.mrf.mxu0
        %v1033 = vadd.f32 0.0, %v1032
        %v1034 = vpop.f32.mrf.mxu0
        %1035 = vdwg.mxu0
        %v1036 = vsel %vm844, %v1033, -inf
        %1037 = vmax.xlane.f32.xlu0 %v1036
        %v1038 = vpop.xlane.xlu0 %1037
        %v1039 = vsub.f32 %v1033, %v1038
        %v1040 = vmul.f32 %v1039, 1.442695
        %v1041 = vpow.pop %v1040
        %v1042 = vsel %vm844, %v1041, 0.0
        %1043 = vadd.xlane.f32.xlu0 %v1042
        %v1044 = vpop.xlane.xlu0 %1043
        %v1045 = vrcp.pop %v1044
        %v1046 = vmul.f32 %v1041, %v1045
        %v1047 = vpack.c.bf16 %v1046, %v1046
        %v1049 = vsel %vm844, %v1047, 0
        %v1052 = vsel %vm860, %v1019, 0
        %1054 = vmatpush.bf16.msra.mxu0 0
        %1055 = vmatpush.bf16.msra.mxu0 0
        %1056 = vmatpush.bf16.msra.mxu0 0
        %1057 = vmatpush.bf16.msra.mxu0 0
        %1058 = vmatpush.bf16.msra.mxu0 0
        %1059 = vmatpush.bf16.msra.mxu0 0
        %1060 = vmatpush.bf16.msra.mxu0 0
        %1061 = vmatpush.bf16.msra.mxu0 %v1052
        %1062 = vmatmul.bf16.gmra.mxu0 %v1049
        %v1063 = vpop.f32.mrf.mxu0
        %v1064 = vadd.f32 0.0, %v1063
        %v1065 = vpop.f32.mrf.mxu0
        %1066 = vdwg.mxu0
        %v1067 = vsel %vm808, %v1064, 0.0
        %v1068 = vadd.f32 %v1067, 0.0
        %1069 = vmatpush.bf16.xpose.msra.mxu0 0
        %1070 = vmatpush.bf16.xpose.msra.mxu0 0
        %1071 = vmatpush.bf16.xpose.msra.mxu0 0
        %1072 = vmatpush.bf16.xpose.msra.mxu0 0
        %1073 = vmatpush.bf16.xpose.msra.mxu0 0
        %1074 = vmatpush.bf16.xpose.msra.mxu0 0
        %1075 = vmatpush.bf16.xpose.msra.mxu0 0
        %1076 = vmatpush.bf16.xpose.msra.mxu0 %v1021
        %1077 = vmatmul.bf16.gmra.mxu0 %v880
        %v1078 = vpop.f32.mrf.mxu0
        %v1079 = vadd.f32 0.0, %v1078
        %v1080 = vpop.f32.mrf.mxu0
        %1081 = vdwg.mxu0
        %v1082 = vsel %vm844, %v1079, -inf
        %1083 = vmax.xlane.f32.xlu0 %v1082
        %v1084 = vpop.xlane.xlu0 %1083
        %v1085 = vsub.f32 %v1079, %v1084
        %v1086 = vmul.f32 %v1085, 1.442695
        %v1087 = vpow.pop %v1086
        %v1088 = vsel %vm844, %v1087, 0.0
        %1089 = vadd.xlane.f32.xlu0 %v1088
        %v1090 = vpop.xlane.xlu0 %1089
        %v1091 = vrcp.pop %v1090
        %v1092 = vmul.f32 %v1087, %v1091
        %v1093 = vpack.c.bf16 %v1092, %v1092
        %v1095 = vsel %vm844, %v1093, 0
        %1097 = vmatpush.bf16.msra.mxu0 0
        %1098 = vmatpush.bf16.msra.mxu0 0
        %1099 = vmatpush.bf16.msra.mxu0 0
        %1100 = vmatpush.bf16.msra.mxu0 0
        %1101 = vmatpush.bf16.msra.mxu0 0
        %1102 = vmatpush.bf16.msra.mxu0 0
        %1103 = vmatpush.bf16.msra.mxu0 0
        %1104 = vmatpush.bf16.msra.mxu0 %v1052
        %1105 = vmatmul.bf16.gmra.mxu0 %v1095
        %v1106 = vpop.f32.mrf.mxu0
        %v1107 = vadd.f32 0.0, %v1106
        %v1108 = vpop.f32.mrf.mxu0
        %1109 = vdwg.mxu0
        %v1110 = vsel %vm812, %v1107, 0.0
        %v1111 = vadd.f32 %v1068, %v1110
        %1112 = vmatpush.bf16.xpose.msra.mxu0 0
        %1113 = vmatpush.bf16.xpose.msra.mxu0 0
        %1114 = vmatpush.bf16.xpose.msra.mxu0 0
        %1115 = vmatpush.bf16.xpose.msra.mxu0 0
        %1116 = vmatpush.bf16.xpose.msra.mxu0 0
        %1117 = vmatpush.bf16.xpose.msra.mxu0 0
        %1118 = vmatpush.bf16.xpose.msra.mxu0 0
        %1119 = vmatpush.bf16.xpose.msra.mxu0 %v1021
        %1120 = vmatmul.bf16.gmra.mxu0 %v926
        %v1121 = vpop.f32.mrf.mxu0
        %v1122 = vadd.f32 0.0, %v1121
        %v1123 = vpop.f32.mrf.mxu0
        %1124 = vdwg.mxu0
        %v1125 = vsel %vm844, %v1122, -inf
        %1126 = vmax.xlane.f32.xlu0 %v1125
        %v1127 = vpop.xlane.xlu0 %1126
        %v1128 = vsub.f32 %v1122, %v1127
        %v1129 = vmul.f32 %v1128, 1.442695
        %v1130 = vpow.pop %v1129
        %v1131 = vsel %vm844, %v1130, 0.0
        %1132 = vadd.xlane.f32.xlu0 %v1131
        %v1133 = vpop.xlane.xlu0 %1132
        %v1134 = vrcp.pop %v1133
        %v1135 = vmul.f32 %v1130, %v1134
        %v1136 = vpack.c.bf16 %v1135, %v1135
        %v1138 = vsel %vm844, %v1136, 0
        %1140 = vmatpush.bf16.msra.mxu0 0
        %1141 = vmatpush.bf16.msra.mxu0 0
        %1142 = vmatpush.bf16.msra.mxu0 0
        %1143 = vmatpush.bf16.msra.mxu0 0
        %1144 = vmatpush.bf16.msra.mxu0 0
        %1145 = vmatpush.bf16.msra.mxu0 0
        %1146 = vmatpush.bf16.msra.mxu0 0
        %1147 = vmatpush.bf16.msra.mxu0 %v1052
        %1148 = vmatmul.bf16.gmra.mxu0 %v1138
        %v1149 = vpop.f32.mrf.mxu0
        %v1150 = vadd.f32 0.0, %v1149
        %v1151 = vpop.f32.mrf.mxu0
        %1152 = vdwg.mxu0
        %v1153 = vsel %vm816, %v1150, 0.0
        %v1154 = vadd.f32 %v1111, %v1153
        %1155 = vmatpush.bf16.xpose.msra.mxu0 0
        %1156 = vmatpush.bf16.xpose.msra.mxu0 0
        %1157 = vmatpush.bf16.xpose.msra.mxu0 0
        %1158 = vmatpush.bf16.xpose.msra.mxu0 0
        %1159 = vmatpush.bf16.xpose.msra.mxu0 0
        %1160 = vmatpush.bf16.xpose.msra.mxu0 0
        %1161 = vmatpush.bf16.xpose.msra.mxu0 0
        %1162 = vmatpush.bf16.xpose.msra.mxu0 %v1021
        %1163 = vmatmul.bf16.gmra.mxu0 %v972
        %v1164 = vpop.f32.mrf.mxu0
        %v1165 = vadd.f32 0.0, %v1164
        %v1166 = vpop.f32.mrf.mxu0
        %1167 = vdwg.mxu0
        %v1168 = vsel %vm844, %v1165, -inf
        %1169 = vmax.xlane.f32.xlu0 %v1168
        %v1170 = vpop.xlane.xlu0 %1169
        %v1171 = vsub.f32 %v1165, %v1170
        %v1172 = vmul.f32 %v1171, 1.442695
        %v1173 = vpow.pop %v1172
        %v1174 = vsel %vm844, %v1173, 0.0
        %1175 = vadd.xlane.f32.xlu0 %v1174
        %v1176 = vpop.xlane.xlu0 %1175
        %v1177 = vrcp.pop %v1176
        %v1178 = vmul.f32 %v1173, %v1177
        %v1179 = vpack.c.bf16 %v1178, %v1178
        %v1181 = vsel %vm844, %v1179, 0
        %1183 = vmatpush.bf16.msra.mxu0 0
        %1184 = vmatpush.bf16.msra.mxu0 0
        %1185 = vmatpush.bf16.msra.mxu0 0
        %1186 = vmatpush.bf16.msra.mxu0 0
        %1187 = vmatpush.bf16.msra.mxu0 0
        %1188 = vmatpush.bf16.msra.mxu0 0
        %1189 = vmatpush.bf16.msra.mxu0 0
        %1190 = vmatpush.bf16.msra.mxu0 %v1052
        %1191 = vmatmul.bf16.gmra.mxu0 %v1181
        %v1192 = vpop.f32.mrf.mxu0
        %v1193 = vadd.f32 0.0, %v1192
        %v1194 = vpop.f32.mrf.mxu0
        %1195 = vdwg.mxu0
        %v1196 = vsel %vm820, %v1193, 0.0
        %v1197 = vadd.f32 %v1154, %v1196
        %v1198 = vadd.f32 %v743, %v1197
        %v1199 = vpack.c.bf16 %v1198, %v1017
        %v1201 = vperm.slane %v711, 0
        %v1207 = vunpack.c.l.b16 %v707
        %v1208 = vunpack.c.l.b16 %v708
        %v1209 = vunpack.c.l.b16 %v709
        %v1210 = vunpack.c.l.b16 %v710
        %v1211 = vpack.c.b16 %v1208, %v1207
        %v1212 = vpack.c.b16 %v1210, %v1209
        %v1216 = vsel %vm729, %v1199, 0
        %1218 = vmatpush.bf16.msra.mxu0 0
        %1219 = vmatpush.bf16.msra.mxu0 0
        %1220 = vmatpush.bf16.msra.mxu0 0
        %1221 = vmatpush.bf16.msra.mxu0 0
        %1222 = vmatpush.bf16.msra.mxu0 0
        %1223 = vmatpush.bf16.msra.mxu0 0
        %1224 = vmatpush.bf16.msra.mxu0 %v1212
        %1225 = vmatpush.bf16.msra.mxu0 %v1211
        %1226 = vmatmul.bf16.gmra.mxu0 %v1216
        %v1227 = vpop.f32.mrf.mxu0
        %v1228 = vadd.f32 %v1201, %v1227
        %v1229 = vpop.f32.mrf.mxu0
        %v1230 = vadd.f32 %v1201, %v1229
        %1231 = vdwg.mxu0
        %v1232 = vmax.f32 %v1228, 0.0
        %v1233 = vmax.f32 %v1230, 0.0
        %v1234 = vadd.f32 %v1017, %v1232
        %v1235 = vadd.f32 %v1198, %v1233
        %v1236 = vld [vmem:[#allocation14] sm:$0x3]
        %v1237 = vld [vmem:[%s11] sm:$0x1]
        %v1238 = vld [vmem:[%s12] sm:$0xf]
        %v1239 = vld [vmem:[%s12 + $0x4] sm:$0xf]
        %v1240 = vld [vmem:[%s12 + $0x8] sm:$0xf]
        %v1241 = vld [vmem:[%s12 + $0xc] sm:$0xf]
        %v1242 = vld [vmem:[%s13] sm:$0x1]
        %v1243 = vld [vmem:[%s14] sm:$0xf]
        %v1244 = vld [vmem:[%s14 + $0x4] sm:$0xf]
        %v1245 = vld [vmem:[%s14 + $0x8] sm:$0xf]
        %v1246 = vld [vmem:[%s14 + $0xc] sm:$0xf]
        %v1247 = vld [vmem:[%s15] sm:$0x1]
        %v1248 = vld [vmem:[%s16] sm:$0xf]
        %v1249 = vld [vmem:[%s16 + $0x4] sm:$0xf]
        %v1250 = vld [vmem:[%s16 + $0x8] sm:$0xf]
        %v1251 = vld [vmem:[%s16 + $0xc] sm:$0xf]
        %v1252 = vld [vmem:[%s17] sm:$0x1]
        %v1253 = vpack.c.bf16 %v1235, %v1234
        %v1255 = vperm.slane %v1237, 0
        %v1258 = vsel %vm753, %v1236, 0
        %1260 = vmatpush.bf16.msra.mxu0 0
        %1261 = vmatpush.bf16.msra.mxu0 0
        %1262 = vmatpush.bf16.msra.mxu0 0
        %1263 = vmatpush.bf16.msra.mxu0 0
        %1264 = vmatpush.bf16.msra.mxu0 0
        %1265 = vmatpush.bf16.msra.mxu0 0
        %1266 = vmatpush.bf16.msra.mxu0 0
        %1267 = vmatpush.bf16.msra.mxu0 %v1258
        %1268 = vmatmul.bf16.gmra.mxu0 %v751
        %v1269 = vpop.f32.mrf.mxu0
        %v1270 = vadd.f32 %v1255, %v1269
        %v1271 = vpop.f32.mrf.mxu0
        %v1272 = vadd.f32 %v1255, %v1271
        %1273 = vdwg.mxu0
        %v1275 = vperm.slane %v1242, 0
        %v1281 = vunpack.c.l.b16 %v1238
        %v1282 = vunpack.c.l.b16 %v1239
        %v1283 = vunpack.c.l.b16 %v1240
        %v1284 = vunpack.c.l.b16 %v1241
        %v1285 = vpack.c.b16 %v1282, %v1281
        %v1286 = vpack.c.b16 %v1284, %v1283
        %v1290 = vsel %vm729, %v1253, 0
        %1292 = vmatpush.bf16.msra.mxu0 0
        %1293 = vmatpush.bf16.msra.mxu0 0
        %1294 = vmatpush.bf16.msra.mxu0 0
        %1295 = vmatpush.bf16.msra.mxu0 0
        %1296 = vmatpush.bf16.msra.mxu0 0
        %1297 = vmatpush.bf16.msra.mxu0 0
        %1298 = vmatpush.bf16.msra.mxu0 %v1286
        %1299 = vmatpush.bf16.msra.mxu0 %v1285
        %1300 = vmatmul.bf16.gmra.mxu0 %v1290
        %v1301 = vpop.f32.mrf.mxu0
        %v1302 = vadd.f32 %v1275, %v1301
        %v1303 = vpop.f32.mrf.mxu0
        %v1304 = vadd.f32 %v1275, %v1303
        %1305 = vdwg.mxu0
        %v1306 = vmul.f32 %v1302, 0.17677669
        %v1307 = vmul.f32 %v1304, 0.17677669
        %v1309 = vperm.slane %v1247, 0
        %v1315 = vunpack.c.l.b16 %v1243
        %v1316 = vunpack.c.l.b16 %v1244
        %v1317 = vunpack.c.l.b16 %v1245
        %v1318 = vunpack.c.l.b16 %v1246
        %v1319 = vpack.c.b16 %v1316, %v1315
        %v1320 = vpack.c.b16 %v1318, %v1317
        %1323 = vmatpush.bf16.msra.mxu0 0
        %1324 = vmatpush.bf16.msra.mxu0 0
        %1325 = vmatpush.bf16.msra.mxu0 0
        %1326 = vmatpush.bf16.msra.mxu0 0
        %1327 = vmatpush.bf16.msra.mxu0 0
        %1328 = vmatpush.bf16.msra.mxu0 0
        %1329 = vmatpush.bf16.msra.mxu0 %v1320
        %1330 = vmatpush.bf16.msra.mxu0 %v1319
        %1331 = vmatmul.bf16.gmra.mxu0 %v1290
        %v1332 = vpop.f32.mrf.mxu0
        %v1333 = vadd.f32 %v1309, %v1332
        %v1334 = vpop.f32.mrf.mxu0
        %v1335 = vadd.f32 %v1309, %v1334
        %1336 = vdwg.mxu0
        %v1337 = vpack.c.bf16 %v1306, %v1306
        %v1338 = vpack.c.bf16 %v1333, %v1333
        %v1339 = vsel %vm808, %v1270, 0.0
        %v1340 = vpack.c.bf16 %v1339, %v1339
        %v1342 = vsel %vm729, %v1340, 0
        %v1345 = vsel %vm729, %v1337, 0
        %1347 = vmatpush.bf16.xpose.msra.mxu0 0
        %1348 = vmatpush.bf16.xpose.msra.mxu0 0
        %1349 = vmatpush.bf16.xpose.msra.mxu0 0
        %1350 = vmatpush.bf16.xpose.msra.mxu0 0
        %1351 = vmatpush.bf16.xpose.msra.mxu0 0
        %1352 = vmatpush.bf16.xpose.msra.mxu0 0
        %1353 = vmatpush.bf16.xpose.msra.mxu0 0
        %1354 = vmatpush.bf16.xpose.msra.mxu0 %v1345
        %1355 = vmatmul.bf16.gmra.mxu0 %v1342
        %v1356 = vpop.f32.mrf.mxu0
        %v1357 = vadd.f32 0.0, %v1356
        %v1358 = vpop.f32.mrf.mxu0
        %1359 = vdwg.mxu0
        %v1360 = vsel %vm844, %v1357, -inf
        %1361 = vmax.xlane.f32.xlu0 %v1360
        %v1362 = vpop.xlane.xlu0 %1361
        %v1363 = vsub.f32 %v1357, %v1362
        %v1364 = vmul.f32 %v1363, 1.442695
        %v1365 = vpow.pop %v1364
        %v1366 = vsel %vm844, %v1365, 0.0
        %1367 = vadd.xlane.f32.xlu0 %v1366
        %v1368 = vpop.xlane.xlu0 %1367
        %v1369 = vrcp.pop %v1368
        %v1370 = vmul.f32 %v1365, %v1369
        %v1371 = vpack.c.bf16 %v1370, %v1370
        %v1373 = vsel %vm844, %v1371, 0
        %v1376 = vsel %vm860, %v1338, 0
        %1378 = vmatpush.bf16.msra.mxu0 0
        %1379 = vmatpush.bf16.msra.mxu0 0
        %1380 = vmatpush.bf16.msra.mxu0 0
        %1381 = vmatpush.bf16.msra.mxu0 0
        %1382 = vmatpush.bf16.msra.mxu0 0
        %1383 = vmatpush.bf16.msra.mxu0 0
        %1384 = vmatpush.bf16.msra.mxu0 0
        %1385 = vmatpush.bf16.msra.mxu0 %v1376
        %1386 = vmatmul.bf16.gmra.mxu0 %v1373
        %v1387 = vpop.f32.mrf.mxu0
        %v1388 = vadd.f32 0.0, %v1387
        %v1389 = vpop.f32.mrf.mxu0
        %1390 = vdwg.mxu0
        %v1391 = vsel %vm808, %v1388, 0.0
        %v1392 = vadd.f32 %v1391, 0.0
        %v1393 = vsel %vm812, %v1270, 0.0
        %v1394 = vpack.c.bf16 %v1393, %v1393
        %v1396 = vsel %vm729, %v1394, 0
        %1398 = vmatpush.bf16.xpose.msra.mxu0 0
        %1399 = vmatpush.bf16.xpose.msra.mxu0 0
        %1400 = vmatpush.bf16.xpose.msra.mxu0 0
        %1401 = vmatpush.bf16.xpose.msra.mxu0 0
        %1402 = vmatpush.bf16.xpose.msra.mxu0 0
        %1403 = vmatpush.bf16.xpose.msra.mxu0 0
        %1404 = vmatpush.bf16.xpose.msra.mxu0 0
        %1405 = vmatpush.bf16.xpose.msra.mxu0 %v1345
        %1406 = vmatmul.bf16.gmra.mxu0 %v1396
        %v1407 = vpop.f32.mrf.mxu0
        %v1408 = vadd.f32 0.0, %v1407
        %v1409 = vpop.f32.mrf.mxu0
        %1410 = vdwg.mxu0
        %v1411 = vsel %vm844, %v1408, -inf
        %1412 = vmax.xlane.f32.xlu0 %v1411
        %v1413 = vpop.xlane.xlu0 %1412
        %v1414 = vsub.f32 %v1408, %v1413
        %v1415 = vmul.f32 %v1414, 1.442695
        %v1416 = vpow.pop %v1415
        %v1417 = vsel %vm844, %v1416, 0.0
        %1418 = vadd.xlane.f32.xlu0 %v1417
        %v1419 = vpop.xlane.xlu0 %1418
        %v1420 = vrcp.pop %v1419
        %v1421 = vmul.f32 %v1416, %v1420
        %v1422 = vpack.c.bf16 %v1421, %v1421
        %v1424 = vsel %vm844, %v1422, 0
        %1426 = vmatpush.bf16.msra.mxu0 0
        %1427 = vmatpush.bf16.msra.mxu0 0
        %1428 = vmatpush.bf16.msra.mxu0 0
        %1429 = vmatpush.bf16.msra.mxu0 0
        %1430 = vmatpush.bf16.msra.mxu0 0
        %1431 = vmatpush.bf16.msra.mxu0 0
        %1432 = vmatpush.bf16.msra.mxu0 0
        %1433 = vmatpush.bf16.msra.mxu0 %v1376
        %1434 = vmatmul.bf16.gmra.mxu0 %v1424
        %v1435 = vpop.f32.mrf.mxu0
        %v1436 = vadd.f32 0.0, %v1435
        %v1437 = vpop.f32.mrf.mxu0
        %1438 = vdwg.mxu0
        %v1439 = vsel %vm812, %v1436, 0.0
        %v1440 = vadd.f32 %v1392, %v1439
        %v1441 = vsel %vm816, %v1270, 0.0
        %v1442 = vpack.c.bf16 %v1441, %v1441
        %v1444 = vsel %vm729, %v1442, 0
        %1446 = vmatpush.bf16.xpose.msra.mxu0 0
        %1447 = vmatpush.bf16.xpose.msra.mxu0 0
        %1448 = vmatpush.bf16.xpose.msra.mxu0 0
        %1449 = vmatpush.bf16.xpose.msra.mxu0 0
        %1450 = vmatpush.bf16.xpose.msra.mxu0 0
        %1451 = vmatpush.bf16.xpose.msra.mxu0 0
        %1452 = vmatpush.bf16.xpose.msra.mxu0 0
        %1453 = vmatpush.bf16.xpose.msra.mxu0 %v1345
        %1454 = vmatmul.bf16.gmra.mxu0 %v1444
        %v1455 = vpop.f32.mrf.mxu0
        %v1456 = vadd.f32 0.0, %v1455
        %v1457 = vpop.f32.mrf.mxu0
        %1458 = vdwg.mxu0
        %v1459 = vsel %vm844, %v1456, -inf
        %1460 = vmax.xlane.f32.xlu0 %v1459
        %v1461 = vpop.xlane.xlu0 %1460
        %v1462 = vsub.f32 %v1456, %v1461
        %v1463 = vmul.f32 %v1462, 1.442695
        %v1464 = vpow.pop %v1463
        %v1465 = vsel %vm844, %v1464, 0.0
        %1466 = vadd.xlane.f32.xlu0 %v1465
        %v1467 = vpop.xlane.xlu0 %1466
        %v1468 = vrcp.pop %v1467
        %v1469 = vmul.f32 %v1464, %v1468
        %v1470 = vpack.c.bf16 %v1469, %v1469
        %v1472 = vsel %vm844, %v1470, 0
        %1474 = vmatpush.bf16.msra.mxu0 0
        %1475 = vmatpush.bf16.msra.mxu0 0
        %1476 = vmatpush.bf16.msra.mxu0 0
        %1477 = vmatpush.bf16.msra.mxu0 0
        %1478 = vmatpush.bf16.msra.mxu0 0
        %1479 = vmatpush.bf16.msra.mxu0 0
        %1480 = vmatpush.bf16.msra.mxu0 0
        %1481 = vmatpush.bf16.msra.mxu0 %v1376
        %1482 = vmatmul.bf16.gmra.mxu0 %v1472
        %v1483 = vpop.f32.mrf.mxu0
        %v1484 = vadd.f32 0.0, %v1483
        %v1485 = vpop.f32.mrf.mxu0
        %1486 = vdwg.mxu0
        %v1487 = vsel %vm816, %v1484, 0.0
        %v1488 = vadd.f32 %v1440, %v1487
        %v1489 = vsel %vm820, %v1270, 0.0
        %v1490 = vpack.c.bf16 %v1489, %v1489
        %v1492 = vsel %vm729, %v1490, 0
        %1494 = vmatpush.bf16.xpose.msra.mxu0 0
        %1495 = vmatpush.bf16.xpose.msra.mxu0 0
        %1496 = vmatpush.bf16.xpose.msra.mxu0 0
        %1497 = vmatpush.bf16.xpose.msra.mxu0 0
        %1498 = vmatpush.bf16.xpose.msra.mxu0 0
        %1499 = vmatpush.bf16.xpose.msra.mxu0 0
        %1500 = vmatpush.bf16.xpose.msra.mxu0 0
        %1501 = vmatpush.bf16.xpose.msra.mxu0 %v1345
        %1502 = vmatmul.bf16.gmra.mxu0 %v1492
        %v1503 = vpop.f32.mrf.mxu0
        %v1504 = vadd.f32 0.0, %v1503
        %v1505 = vpop.f32.mrf.mxu0
        %1506 = vdwg.mxu0
        %v1507 = vsel %vm844, %v1504, -inf
        %1508 = vmax.xlane.f32.xlu0 %v1507
        %v1509 = vpop.xlane.xlu0 %1508
        %v1510 = vsub.f32 %v1504, %v1509
        %v1511 = vmul.f32 %v1510, 1.442695
        %v1512 = vpow.pop %v1511
        %v1513 = vsel %vm844, %v1512, 0.0
        %1514 = vadd.xlane.f32.xlu0 %v1513
        %v1515 = vpop.xlane.xlu0 %1514
        %v1516 = vrcp.pop %v1515
        %v1517 = vmul.f32 %v1512, %v1516
        %v1518 = vpack.c.bf16 %v1517, %v1517
        %v1520 = vsel %vm844, %v1518, 0
        %1522 = vmatpush.bf16.msra.mxu0 0
        %1523 = vmatpush.bf16.msra.mxu0 0
        %1524 = vmatpush.bf16.msra.mxu0 0
        %1525 = vmatpush.bf16.msra.mxu0 0
        %1526 = vmatpush.bf16.msra.mxu0 0
        %1527 = vmatpush.bf16.msra.mxu0 0
        %1528 = vmatpush.bf16.msra.mxu0 0
        %1529 = vmatpush.bf16.msra.mxu0 %v1376
        %1530 = vmatmul.bf16.gmra.mxu0 %v1520
        %v1531 = vpop.f32.mrf.mxu0
        %v1532 = vadd.f32 0.0, %v1531
        %v1533 = vpop.f32.mrf.mxu0
        %1534 = vdwg.mxu0
        %v1535 = vsel %vm820, %v1532, 0.0
        %v1536 = vadd.f32 %v1488, %v1535
        %v1537 = vadd.f32 %v1270, %v1536
        %v1538 = vpack.c.bf16 %v1307, %v1307
        %v1539 = vpack.c.bf16 %v1335, %v1335
        %v1540 = vsel %vm808, %v1272, 0.0
        %v1541 = vpack.c.bf16 %v1540, %v1540
        %v1543 = vsel %vm729, %v1541, 0
        %v1546 = vsel %vm729, %v1538, 0
        %1548 = vmatpush.bf16.xpose.msra.mxu0 0
        %1549 = vmatpush.bf16.xpose.msra.mxu0 0
        %1550 = vmatpush.bf16.xpose.msra.mxu0 0
        %1551 = vmatpush.bf16.xpose.msra.mxu0 0
        %1552 = vmatpush.bf16.xpose.msra.mxu0 0
        %1553 = vmatpush.bf16.xpose.msra.mxu0 0
        %1554 = vmatpush.bf16.xpose.msra.mxu0 0
        %1555 = vmatpush.bf16.xpose.msra.mxu0 %v1546
        %1556 = vmatmul.bf16.gmra.mxu0 %v1543
        %v1557 = vpop.f32.mrf.mxu0
        %v1558 = vadd.f32 0.0, %v1557
        %v1559 = vpop.f32.mrf.mxu0
        %1560 = vdwg.mxu0
        %v1561 = vsel %vm844, %v1558, -inf
        %1562 = vmax.xlane.f32.xlu0 %v1561
        %v1563 = vpop.xlane.xlu0 %1562
        %v1564 = vsub.f32 %v1558, %v1563
        %v1565 = vmul.f32 %v1564, 1.442695
        %v1566 = vpow.pop %v1565
        %v1567 = vsel %vm844, %v1566, 0.0
        %1568 = vadd.xlane.f32.xlu0 %v1567
        %v1569 = vpop.xlane.xlu0 %1568
        %v1570 = vrcp.pop %v1569
        %v1571 = vmul.f32 %v1566, %v1570
        %v1572 = vpack.c.bf16 %v1571, %v1571
        %v1574 = vsel %vm844, %v1572, 0
        %v1577 = vsel %vm860, %v1539, 0
        %1579 = vmatpush.bf16.msra.mxu0 0
        %1580 = vmatpush.bf16.msra.mxu0 0
        %1581 = vmatpush.bf16.msra.mxu0 0
        %1582 = vmatpush.bf16.msra.mxu0 0
        %1583 = vmatpush.bf16.msra.mxu0 0
        %1584 = vmatpush.bf16.msra.mxu0 0
        %1585 = vmatpush.bf16.msra.mxu0 0
        %1586 = vmatpush.bf16.msra.mxu0 %v1577
        %1587 = vmatmul.bf16.gmra.mxu0 %v1574
        %v1588 = vpop.f32.mrf.mxu0
        %v1589 = vadd.f32 0.0, %v1588
        %v1590 = vpop.f32.mrf.mxu0
        %1591 = vdwg.mxu0
        %v1592 = vsel %vm808, %v1589, 0.0
        %v1593 = vadd.f32 %v1592, 0.0
        %v1594 = vsel %vm812, %v1272, 0.0
        %v1595 = vpack.c.bf16 %v1594, %v1594
        %v1597 = vsel %vm729, %v1595, 0
        %1599 = vmatpush.bf16.xpose.msra.mxu0 0
        %1600 = vmatpush.bf16.xpose.msra.mxu0 0
        %1601 = vmatpush.bf16.xpose.msra.mxu0 0
        %1602 = vmatpush.bf16.xpose.msra.mxu0 0
        %1603 = vmatpush.bf16.xpose.msra.mxu0 0
        %1604 = vmatpush.bf16.xpose.msra.mxu0 0
        %1605 = vmatpush.bf16.xpose.msra.mxu0 0
        %1606 = vmatpush.bf16.xpose.msra.mxu0 %v1546
        %1607 = vmatmul.bf16.gmra.mxu0 %v1597
        %v1608 = vpop.f32.mrf.mxu0
        %v1609 = vadd.f32 0.0, %v1608
        %v1610 = vpop.f32.mrf.mxu0
        %1611 = vdwg.mxu0
        %v1612 = vsel %vm844, %v1609, -inf
        %1613 = vmax.xlane.f32.xlu0 %v1612
        %v1614 = vpop.xlane.xlu0 %1613
        %v1615 = vsub.f32 %v1609, %v1614
        %v1616 = vmul.f32 %v1615, 1.442695
        %v1617 = vpow.pop %v1616
        %v1618 = vsel %vm844, %v1617, 0.0
        %1619 = vadd.xlane.f32.xlu0 %v1618
        %v1620 = vpop.xlane.xlu0 %1619
        %v1621 = vrcp.pop %v1620
        %v1622 = vmul.f32 %v1617, %v1621
        %v1623 = vpack.c.bf16 %v1622, %v1622
        %v1625 = vsel %vm844, %v1623, 0
        %1627 = vmatpush.bf16.msra.mxu0 0
        %1628 = vmatpush.bf16.msra.mxu0 0
        %1629 = vmatpush.bf16.msra.mxu0 0
        %1630 = vmatpush.bf16.msra.mxu0 0
        %1631 = vmatpush.bf16.msra.mxu0 0
        %1632 = vmatpush.bf16.msra.mxu0 0
        %1633 = vmatpush.bf16.msra.mxu0 0
        %1634 = vmatpush.bf16.msra.mxu0 %v1577
        %1635 = vmatmul.bf16.gmra.mxu0 %v1625
        %v1636 = vpop.f32.mrf.mxu0
        %v1637 = vadd.f32 0.0, %v1636
        %v1638 = vpop.f32.mrf.mxu0
        %1639 = vdwg.mxu0
        %v1640 = vsel %vm812, %v1637, 0.0
        %v1641 = vadd.f32 %v1593, %v1640
        %v1642 = vsel %vm816, %v1272, 0.0
        %v1643 = vpack.c.bf16 %v1642, %v1642
        %v1645 = vsel %vm729, %v1643, 0
        %1647 = vmatpush.bf16.xpose.msra.mxu0 0
        %1648 = vmatpush.bf16.xpose.msra.mxu0 0
        %1649 = vmatpush.bf16.xpose.msra.mxu0 0
        %1650 = vmatpush.bf16.xpose.msra.mxu0 0
        %1651 = vmatpush.bf16.xpose.msra.mxu0 0
        %1652 = vmatpush.bf16.xpose.msra.mxu0 0
        %1653 = vmatpush.bf16.xpose.msra.mxu0 0
        %1654 = vmatpush.bf16.xpose.msra.mxu0 %v1546
        %1655 = vmatmul.bf16.gmra.mxu0 %v1645
        %v1656 = vpop.f32.mrf.mxu0
        %v1657 = vadd.f32 0.0, %v1656
        %v1658 = vpop.f32.mrf.mxu0
        %1659 = vdwg.mxu0
        %v1660 = vsel %vm844, %v1657, -inf
        %1661 = vmax.xlane.f32.xlu0 %v1660
        %v1662 = vpop.xlane.xlu0 %1661
        %v1663 = vsub.f32 %v1657, %v1662
        %v1664 = vmul.f32 %v1663, 1.442695
        %v1665 = vpow.pop %v1664
        %v1666 = vsel %vm844, %v1665, 0.0
        %1667 = vadd.xlane.f32.xlu0 %v1666
        %v1668 = vpop.xlane.xlu0 %1667
        %v1669 = vrcp.pop %v1668
        %v1670 = vmul.f32 %v1665, %v1669
        %v1671 = vpack.c.bf16 %v1670, %v1670
        %v1673 = vsel %vm844, %v1671, 0
        %1675 = vmatpush.bf16.msra.mxu0 0
        %1676 = vmatpush.bf16.msra.mxu0 0
        %1677 = vmatpush.bf16.msra.mxu0 0
        %1678 = vmatpush.bf16.msra.mxu0 0
        %1679 = vmatpush.bf16.msra.mxu0 0
        %1680 = vmatpush.bf16.msra.mxu0 0
        %1681 = vmatpush.bf16.msra.mxu0 0
        %1682 = vmatpush.bf16.msra.mxu0 %v1577
        %1683 = vmatmul.bf16.gmra.mxu0 %v1673
        %v1684 = vpop.f32.mrf.mxu0
        %v1685 = vadd.f32 0.0, %v1684
        %v1686 = vpop.f32.mrf.mxu0
        %1687 = vdwg.mxu0
        %v1688 = vsel %vm816, %v1685, 0.0
        %v1689 = vadd.f32 %v1641, %v1688
        %v1690 = vsel %vm820, %v1272, 0.0
        %v1691 = vpack.c.bf16 %v1690, %v1690
        %v1693 = vsel %vm729, %v1691, 0
        %1695 = vmatpush.bf16.xpose.msra.mxu0 0
        %1696 = vmatpush.bf16.xpose.msra.mxu0 0
        %1697 = vmatpush.bf16.xpose.msra.mxu0 0
        %1698 = vmatpush.bf16.xpose.msra.mxu0 0
        %1699 = vmatpush.bf16.xpose.msra.mxu0 0
        %1700 = vmatpush.bf16.xpose.msra.mxu0 0
        %1701 = vmatpush.bf16.xpose.msra.mxu0 0
        %1702 = vmatpush.bf16.xpose.msra.mxu0 %v1546
        %1703 = vmatmul.bf16.gmra.mxu0 %v1693
        %v1704 = vpop.f32.mrf.mxu0
        %v1705 = vadd.f32 0.0, %v1704
        %v1706 = vpop.f32.mrf.mxu0
        %1707 = vdwg.mxu0
        %v1708 = vsel %vm844, %v1705, -inf
        %1709 = vmax.xlane.f32.xlu0 %v1708
        %v1710 = vpop.xlane.xlu0 %1709
        %v1711 = vsub.f32 %v1705, %v1710
        %v1712 = vmul.f32 %v1711, 1.442695
        %v1713 = vpow.pop %v1712
        %v1714 = vsel %vm844, %v1713, 0.0
        %1715 = vadd.xlane.f32.xlu0 %v1714
        %v1716 = vpop.xlane.xlu0 %1715
        %v1717 = vrcp.pop %v1716
        %v1718 = vmul.f32 %v1713, %v1717
        %v1719 = vpack.c.bf16 %v1718, %v1718
        %v1721 = vsel %vm844, %v1719, 0
        %1723 = vmatpush.bf16.msra.mxu0 0
        %1724 = vmatpush.bf16.msra.mxu0 0
        %1725 = vmatpush.bf16.msra.mxu0 0
        %1726 = vmatpush.bf16.msra.mxu0 0
        %1727 = vmatpush.bf16.msra.mxu0 0
        %1728 = vmatpush.bf16.msra.mxu0 0
        %1729 = vmatpush.bf16.msra.mxu0 0
        %1730 = vmatpush.bf16.msra.mxu0 %v1577
        %1731 = vmatmul.bf16.gmra.mxu0 %v1721
        %v1732 = vpop.f32.mrf.mxu0
        %v1733 = vadd.f32 0.0, %v1732
        %v1734 = vpop.f32.mrf.mxu0
        %1735 = vdwg.mxu0
        %v1736 = vsel %vm820, %v1733, 0.0
        %v1737 = vadd.f32 %v1689, %v1736
        %v1738 = vadd.f32 %v1272, %v1737
        %v1739 = vpack.c.bf16 %v1738, %v1537
        %v1741 = vperm.slane %v1252, 0
        %v1747 = vunpack.c.l.b16 %v1248
        %v1748 = vunpack.c.l.b16 %v1249
        %v1749 = vunpack.c.l.b16 %v1250
        %v1750 = vunpack.c.l.b16 %v1251
        %v1751 = vpack.c.b16 %v1748, %v1747
        %v1752 = vpack.c.b16 %v1750, %v1749
        %v1756 = vsel %vm729, %v1739, 0
        %1758 = vmatpush.bf16.msra.mxu0 0
        %1759 = vmatpush.bf16.msra.mxu0 0
        %1760 = vmatpush.bf16.msra.mxu0 0
        %1761 = vmatpush.bf16.msra.mxu0 0
        %1762 = vmatpush.bf16.msra.mxu0 0
        %1763 = vmatpush.bf16.msra.mxu0 0
        %1764 = vmatpush.bf16.msra.mxu0 %v1752
        %1765 = vmatpush.bf16.msra.mxu0 %v1751
        %1766 = vmatmul.bf16.gmra.mxu0 %v1756
        %v1767 = vpop.f32.mrf.mxu0
        %v1768 = vadd.f32 %v1741, %v1767
        %v1769 = vpop.f32.mrf.mxu0
        %v1770 = vadd.f32 %v1741, %v1769
        %1771 = vdwg.mxu0
        %v1772 = vmax.f32 %v1768, 0.0
        %v1773 = vmax.f32 %v1770, 0.0
        %v1774 = vadd.f32 %v1537, %v1772
        %v1775 = vadd.f32 %v1738, %v1773
        %1776 = vst.msk [vmem:[%s686] sm:$0xff] %vm729, %v1774
        %1777 = vst.msk [vmem:[%s686 + $0x8] sm:$0xff] %vm729, %v1775
        %s1778 = sand.u32 %s428, 1
        %s1779 = scalar_lea.sflag [#allocation4], %s1778
        %s1780 = sand.u32 %s428, 1
        %s1781 = smul.addr %s1780, 16
        %s1782 = scalar_lea.vmem [#allocation16], %s1781
        // Predicated region
        $region125: #{tpu_custom_call.1} parent=91 // pred_check
          %p1783 = pneg %p438
        $region126: #{tpu_custom_call.1} parent=91 // pred_check_branch
          %1785 = sbr.rel (%p1783) target = $region128
        $region127: #{tpu_custom_call.1} parent=91 // pred_region
          %s1786 = smul.u32 2, %s37
          %1788 = vsyncadd %s1779, 0
          %s1789 = smul.addr %s1786, 8
          %s1790 = scalar_lea.hbm %s18, %s1789
          %s1791 = sshll.u32 %s1782, 4
          %s1792 = int_to_ptr.vmem [resolvable:$true] %s1791
          %s1793 = sshll.u32 %s1790, 4
          %s1794 = int_to_ptr.hbm [resolvable:$true] %s1793
          %1799 = dma.vmem_to_hbm [thread:$0]  %s1792, 256, %s1794, %s1779, 128, 128, 8
        $region128: #{tpu_custom_call.1} parent=91 // pred_fallthru
          _
      $region92: #{tpu_custom_call.1} parent=5 // pred_fallthru
        _
      %p1800 = scmp.le.s32.totalorder 2, %s32
      // Predicated region
      $region129: #{tpu_custom_call.1} parent=5 // pred_check
        %p1801 = pneg %p1800
      $region130: #{tpu_custom_call.1} parent=5 // pred_check_branch
        %1803 = sbr.rel (%p1801) target = $region132
      $region131: #{tpu_custom_call.1} parent=5 // pred_region
        %s1804 = ssub.s32 %s32, 2
        // Predicated region
        $region133: #{tpu_custom_call.1} parent=131 // pred_check
          %p1805 = pneg %p444
        $region134: #{tpu_custom_call.1} parent=131 // pred_check_branch
          %1807 = sbr.rel (%p1805) target = $region136
        $region135: #{tpu_custom_call.1} parent=131 // pred_region
          %s1808 = sand.u32 %s429, 1
          %s1809 = scalar_lea.sflag [#allocation4], %s1808
          %s1810 = sand.u32 %s429, 1
          %s1811 = smul.addr %s1810, 16
          %s1812 = scalar_lea.vmem [#allocation16], %s1811
          %1814 = dma.done %s1809, 256
        $region136: #{tpu_custom_call.1} parent=131 // pred_fallthru
          _
      $region132: #{tpu_custom_call.1} parent=5 // pred_fallthru
        _
    $region6: #{tpu_custom_call.1} parent=1 // loop_footer
      %s36 = sadd.s32 1, %s32
    $region7: #{tpu_custom_call.1} parent=1 // loop_footer_branch
      %31 = sbr.rel target = $region3
    $region8: #{tpu_custom_call.1} parent=1 // loop_exit
      _
    %1815 = vsyncpa [#allocation3], 1
    %s1816 = scalar_lea.sflag [#allocation3], 1
    %1817 = vsyncpa %s1816, 1
    %1818 = vsyncpa [#allocation6], 1
    %1819 = vsyncpa [#allocation9], 1
    %1820 = vsyncpa [#allocation12], 1
    %1821 = vsyncpa [#allocation15], 1
    %1822 = vsyncpa [#allocation4], 1
    %s1823 = scalar_lea.sflag [#allocation4], 1
    %1824 = vsyncpa %s1823, 1

</llo_original>
